<compile_context>
chip_gen: v7x
topology: tpu7x:2x2x1
jax: 0.10.0
libtpu: 0.0.40
codegen_flags: <defaults>
</compile_context>

<pallas_src>
import numpy as np
import jax
import jax.numpy as jnp
from jax.experimental import pallas as pl
from jax.experimental.pallas import tpu as pltpu

STATE_EMBED_DIM = 8      # GRU hidden size (= USER_EMBED_DIM / 2)
USER_EMBED_DIM = 16      # bprofile2vec output dim
NUM_STREAMS = 4          # det / add / add_ / ac GRUs
GATE_PAD = 128           # lane-aligned width of one gate block (>= NUM_STREAMS * H)
SUBLANE = 8              # batch rows padded to a sublane multiple


def state_rep_kernel(x_ref, lens_ref, wcomb_ref, bcomb_ref, whh_ref, bhh_ref,
                     pmat_ref, out_ref):
    """Single gridless invocation: all 4 stream-GRUs batched via block-diagonal,
    gate-padded fused weights; recurrence + freeze + permutation epilogue fused.

    x_ref    : (T*B_pad, S*F)     time-major rows (row = t*B_pad + b)
    lens_ref : (B_pad, 128)       per-row sequence length broadcast over the
                                  stream-blocked hidden columns (0 in padding)
    wcomb_ref: (S*F, 3*128)       folded embed + W_ih, gate blocks of 128 lanes
    bcomb_ref: (1, 3*128)
    whh_ref  : (128, 3*128)       block-diagonal W_hh in the padded layout
    bhh_ref  : (1, 3*128)
    pmat_ref : (S, B_pad, B_pad)  per-stream permutation (x valid) matrices
    out_ref  : (B_pad, 128)       permuted final hidden states, cols [0, S*H)
    """
    Bp, GP = out_ref.shape
    TB = x_ref.shape[0]
    T = TB // Bp
    H = STATE_EMBED_DIM
    S = NUM_STREAMS

    # One matmul for embedding + input projection of ALL streams & timesteps.
    x_proj = jnp.dot(x_ref[...], wcomb_ref[...],
                     preferred_element_type=jnp.float32) + bcomb_ref[...]   # (T*Bp, 3*GP)

    w_hh = whh_ref[...]                                                      # (GP, 3*GP)
    b_hh = bhh_ref[...]                                                      # (1, 3*GP)
    lens = lens_ref[...]                                                     # (Bp, GP)

    h = jnp.zeros((Bp, GP), jnp.float32)
    # T is small & static -> fully unrolled python loop (scheduler sees all of it).
    for t in range(T):
        xp = x_proj[t * Bp:(t + 1) * Bp, :]                   # aligned 8-row view
        hp = jnp.dot(h, w_hh, preferred_element_type=jnp.float32) + b_hh
        r = jax.nn.sigmoid(xp[:, 0:GP] + hp[:, 0:GP])                 # lane-aligned
        z = jax.nn.sigmoid(xp[:, GP:2 * GP] + hp[:, GP:2 * GP])       # gate blocks
        n = jnp.tanh(xp[:, 2 * GP:3 * GP] + r * hp[:, 2 * GP:3 * GP])
        h_new = (1.0 - z) * n + z * h
        h = jnp.where(lens > t, h_new, h)                     # single-select freeze

    # Fused epilogue: out[b, s*H:(s+1)*H] = valid[b,s] * h[perm[b,s], s*H:(s+1)*H]
    col = jax.lax.broadcasted_iota(jnp.int32, (Bp, GP), 1)
    out = jnp.zeros((Bp, GP), jnp.float32)
    for s in range(S):
        perm_h = jnp.dot(pmat_ref[s], h, preferred_element_type=jnp.float32)  # (Bp, GP)
        in_block = jnp.logical_and(col >= s * H, col < (s + 1) * H)
        out = jnp.where(in_block, perm_h, out)
    out_ref[...] = out


def run_state_rep_kernel(x_big, lens_exp, w_comb, b_comb, w_hh, b_hh, pmat, *, b_pad):
    return pl.pallas_call(
        state_rep_kernel,
        out_shape=jax.ShapeDtypeStruct((b_pad, GATE_PAD), jnp.float32),
        in_specs=[pl.BlockSpec(memory_space=pltpu.MemorySpace.VMEM) for _ in range(7)],
        out_specs=pl.BlockSpec(memory_space=pltpu.MemorySpace.VMEM),
    )(x_big, lens_exp, w_comb, b_comb, w_hh, b_hh, pmat)


def fuse_params(params):
    """Fold embedding + 3 GRU gates of all streams into block-diagonal, gate-major
    fused weights, with each gate block padded to 128 lanes and the hidden layout
    padded to 128 columns (done once in numpy; exact f32)."""
    we, be, wih, whh, bih, bhh = [np.asarray(p, np.float32) for p in params]
    S, _, E, H = wih.shape
    F = we.shape[0]
    GP = GATE_PAD
    w_comb = np.zeros((S * F, 3 * GP), np.float32)
    w_hh = np.zeros((GP, 3 * GP), np.float32)
    b_comb = np.zeros((1, 3 * GP), np.float32)
    b_hh = np.zeros((1, 3 * GP), np.float32)
    for s in range(S):
        for g in range(3):                       # gate order r | z | n
            c0 = g * GP + s * H
            w_comb[s * F:(s + 1) * F, c0:c0 + H] = we @ wih[s, g]
            w_hh[s * H:(s + 1) * H, c0:c0 + H] = whh[s, g]
            b_comb[0, c0:c0 + H] = (be @ wih[s, g] + bih[s, g])[0]
            b_hh[0, c0:c0 + H] = bhh[s, g][0]
    return (jnp.asarray(w_comb), jnp.asarray(b_comb),
            jnp.asarray(w_hh), jnp.asarray(b_hh))


def _process_seq_index(lens_1d):
    """Replicates StateRep.process_seq indexing semantics (including the
    re-index-by-ind_sort behavior of the original code) as gather indices."""
    # TODO(synk): host-side numpy over concrete lengths; mirrors the original
    # module's Python-level branching on lens (not jittable with traced lens).
    lens_1d = np.asarray(lens_1d)
    B = lens_1d.shape[0]
    perm = np.zeros(B, dtype=np.int32)
    valid = np.zeros(B, dtype=np.float32)
    pos = np.nonzero(lens_1d > 0)[0]
    if pos.shape[0] == B:                          # all lengths > 0  (full branch)
        ind_sort = np.argsort(-lens_1d, kind="stable")
        perm = ind_sort[ind_sort].astype(np.int32)
        valid[:] = 1.0
    elif pos.shape[0] == 0:                        # all lengths == 0 -> zeros
        pass
    else:                                          # mixed: subset, sort, scatter back
        ind_sort = np.argsort(-lens_1d[pos], kind="stable")
        for ind, idx in enumerate(pos):
            perm[idx] = pos[ind_sort[ind_sort[ind]]]
            valid[idx] = 1.0
    return perm, valid


def init_params(key, feat_dim):
    H, E, S = STATE_EMBED_DIM, USER_EMBED_DIM, NUM_STREAMS
    k_embed, k_gru = jax.random.split(key)
    # TODO(synk): bprofile2vec is an external module passed to __init__; it is
    # synthesized here as a deterministic linear embedding of the flattened profile.
    we = jax.random.uniform(k_embed, (feat_dim, E), jnp.float32, -0.3, 0.3)
    be = jax.random.uniform(jax.random.fold_in(k_embed, 1), (1, E), jnp.float32, -0.3, 0.3)
    bound = 1.0 / np.sqrt(H)                       # PyTorch GRU default init range
    ks = jax.random.split(k_gru, 4)
    wih = jax.random.uniform(ks[0], (S, 3, E, H), jnp.float32, -bound, bound)
    whh = jax.random.uniform(ks[1], (S, 3, H, H), jnp.float32, -bound, bound)
    bih = jax.random.uniform(ks[2], (S, 3, 1, H), jnp.float32, -bound, bound)
    bhh = jax.random.uniform(ks[3], (S, 3, 1, H), jnp.float32, -bound, bound)
    return we, be, wih, whh, bih, bhh


def state_rep_forward(a_bseq_profiless, a_bseq_lenss, fused):
    """Equivalent of StateRep.forward: returns [B, 4 * STATE_EMBED_DIM]."""
    w_comb, b_comb, w_hh, b_hh = fused
    B, S, T, P1, P2 = a_bseq_profiless.shape
    F = P1 * P2
    H = STATE_EMBED_DIM
    SH = S * H
    B_pad = max(SUBLANE, ((B + SUBLANE - 1) // SUBLANE) * SUBLANE)

    # Time-major, batch-padded, stream-blocked packing: row = t*B_pad + b.
    x = jnp.asarray(a_bseq_profiless, jnp.float32).reshape(B, S, T, F)
    x = jnp.transpose(x, (2, 0, 1, 3)).reshape(T, B, S * F)
    x = jnp.pad(x, ((0, 0), (0, B_pad - B), (0, 0)))
    x_big = x.reshape(T * B_pad, S * F)

    # TODO(synk): process_seq's data-dependent subset/argsort branching needs
    # concrete lengths, so lens is read on host (as the PyTorch module also does
    # via Python-level if/for over lens).
    lens_bs = np.asarray(a_bseq_lenss).astype(np.int64)                      # (B, S)

    # Tiny (B_pad, 128) per-row length map over the stream-blocked hidden columns;
    # the per-step freeze mask is built from it in-kernel (compare + select).
    lens_exp = np.zeros((B_pad, GATE_PAD), np.float32)
    lens_exp[:B, :SH] = np.repeat(lens_bs.astype(np.float32), H, axis=1)

    # Per-stream permutation (+ valid-zeroing) matrices for the fused epilogue.
    pmat = np.zeros((S, B_pad, B_pad), np.float32)
    for s in range(S):
        perm, valid = _process_seq_index(lens_bs[:, s])
        for b in range(B):
            pmat[s, b, perm[b]] = valid[b]

    out_pad = run_state_rep_kernel(x_big, jnp.asarray(lens_exp), w_comb, b_comb,
                                   w_hh, b_hh, jnp.asarray(pmat), b_pad=B_pad)
    return out_pad[:B, :SH]


def make_state_rep(params):
    """One-time weight fold + device upload (cached); returns forward callable."""
    fused = fuse_params(params)

    def forward(a_bseq_profiless, a_bseq_lenss):
        return state_rep_forward(a_bseq_profiless, a_bseq_lenss, fused)

    return forward


def reference_forward(profiless, lenss, params):
    """Pure-numpy reference of the same semantics."""
    we, be, wih, whh, bih, bhh = [np.asarray(p, np.float32) for p in params]
    B, S, T, P1, P2 = profiless.shape
    H = STATE_EMBED_DIM
    profiless = np.asarray(profiless, np.float32)
    lenss = np.asarray(lenss)

    def sig(v):
        return 1.0 / (1.0 + np.exp(-v))

    h_final = np.zeros((S, B, H), np.float32)
    for s in range(S):
        x = profiless[:, s].reshape(B, T, P1 * P2)
        emb = x @ we + be[0]
        for b in range(B):
            h = np.zeros(H, np.float32)
            for t in range(int(lenss[b, s])):
                r = sig(emb[b, t] @ wih[s, 0] + bih[s, 0, 0] + h @ whh[s, 0] + bhh[s, 0, 0])
                z = sig(emb[b, t] @ wih[s, 1] + bih[s, 1, 0] + h @ whh[s, 1] + bhh[s, 1, 0])
                n = np.tanh(emb[b, t] @ wih[s, 2] + bih[s, 2, 0]
                            + r * (h @ whh[s, 2] + bhh[s, 2, 0]))
                h = (1.0 - z) * n + z * h
            h_final[s, b] = h
    outs = []
    for s in range(S):
        perm, valid = _process_seq_index(lenss[:, s])
        outs.append(h_final[s][perm] * valid[:, None])
    return np.concatenate(outs, axis=-1)


if __name__ == "__main__":
    B, S, T, P1, P2 = 4, NUM_STREAMS, 8, 4, 6
    key = jax.random.PRNGKey(0)
    k_prof, k_param = jax.random.split(key)
    a_bseq_profiless = jax.random.normal(k_prof, (B, S, T, P1, P2), jnp.float32)
    # lenss[b, s]: stream 0 & 3 all > 0 (full branch), stream 1 mixed, stream 2 all zero.
    a_bseq_lenss = jnp.array([[8, 3, 0, 5],
                              [5, 0, 0, 2],
                              [2, 7, 0, 8],
                              [6, 1, 0, 1]], dtype=jnp.int32)

    params = init_params(k_param, P1 * P2)
    forward = make_state_rep(params)       # weight fold + H2D cached at init

    out = forward(a_bseq_profiless, a_bseq_lenss)
    out = jax.block_until_ready(out)

    ref = reference_forward(np.asarray(a_bseq_profiless), np.asarray(a_bseq_lenss), params)
    assert out.shape == (B, S * STATE_EMBED_DIM)
    np.testing.assert_allclose(np.asarray(out), ref, rtol=1e-3, atol=1e-4)
    print("KERNEL_OK")
</pallas_src>

<mosaic_0001>
module attributes {stable_mosaic.version = 11 : i64} {
  func.func @state_rep_kernel(%arg0: memref<64x96xf32, #tpu.memory_space<vmem>>, %arg1: memref<8x128xf32, #tpu.memory_space<vmem>>, %arg2: memref<96x384xf32, #tpu.memory_space<vmem>>, %arg3: memref<1x384xf32, #tpu.memory_space<vmem>>, %arg4: memref<128x384xf32, #tpu.memory_space<vmem>>, %arg5: memref<1x384xf32, #tpu.memory_space<vmem>>, %arg6: memref<4x8x8xf32, #tpu.memory_space<vmem>>, %arg7: memref<8x128xf32, #tpu.memory_space<vmem>>) attributes {dimension_semantics = [], scalar_prefetch = 0 : i64, scratch_operands = 0 : i64, tpu.core_type = #tpu.core_type<tc>} {
    %c0 = arith.constant 0 : index
    %c0_0 = arith.constant 0 : index
    %0 = vector.load %arg0[%c0, %c0_0] : memref<64x96xf32, #tpu.memory_space<vmem>>, vector<64x96xf32>
    %c0_1 = arith.constant 0 : index
    %c0_2 = arith.constant 0 : index
    %1 = vector.load %arg2[%c0_1, %c0_2] : memref<96x384xf32, #tpu.memory_space<vmem>>, vector<96x384xf32>
    %cst = arith.constant dense<0.000000e+00> : vector<64x384xf32>
    %2 = tpu.matmul %0, %1, %cst {dimension_numbers = #tpu.dot_dimension_numbers<[1], [0], [0], [1], [0, 0, 1, 1], [], []>} : vector<64x96xf32>, vector<96x384xf32>, vector<64x384xf32> -> vector<64x384xf32>
    %c0_3 = arith.constant 0 : index
    %c0_4 = arith.constant 0 : index
    %3 = vector.load %arg3[%c0_3, %c0_4] : memref<1x384xf32, #tpu.memory_space<vmem>>, vector<1x384xf32>
    %4 = vector.broadcast %3 : vector<1x384xf32> to vector<64x384xf32>
    %5 = arith.addf %2, %4 : vector<64x384xf32>
    %c0_5 = arith.constant 0 : index
    %c0_6 = arith.constant 0 : index
    %6 = vector.load %arg4[%c0_5, %c0_6] : memref<128x384xf32, #tpu.memory_space<vmem>>, vector<128x384xf32>
    %c0_7 = arith.constant 0 : index
    %c0_8 = arith.constant 0 : index
    %7 = vector.load %arg5[%c0_7, %c0_8] : memref<1x384xf32, #tpu.memory_space<vmem>>, vector<1x384xf32>
    %c0_9 = arith.constant 0 : index
    %c0_10 = arith.constant 0 : index
    %8 = vector.load %arg1[%c0_9, %c0_10] : memref<8x128xf32, #tpu.memory_space<vmem>>, vector<8x128xf32>
    %cst_11 = arith.constant 0.000000e+00 : f32
    %9 = vector.broadcast %cst_11 : f32 to vector<8x128xf32>
    %10 = vector.extract_strided_slice %5 {offsets = [0, 0], sizes = [8, 384], strides = [1, 1]} : vector<64x384xf32> to vector<8x384xf32>
    %cst_12 = arith.constant dense<0.000000e+00> : vector<8x384xf32>
    %11 = tpu.matmul %9, %6, %cst_12 {dimension_numbers = #tpu.dot_dimension_numbers<[1], [0], [0], [1], [0, 0, 1, 1], [], []>} : vector<8x128xf32>, vector<128x384xf32>, vector<8x384xf32> -> vector<8x384xf32>
    %12 = vector.broadcast %7 : vector<1x384xf32> to vector<8x384xf32>
    %13 = arith.addf %11, %12 : vector<8x384xf32>
    %14 = vector.extract_strided_slice %10 {offsets = [0, 0], sizes = [8, 128], strides = [1, 1]} : vector<8x384xf32> to vector<8x128xf32>
    %15 = vector.extract_strided_slice %13 {offsets = [0, 0], sizes = [8, 128], strides = [1, 1]} : vector<8x384xf32> to vector<8x128xf32>
    %16 = arith.addf %14, %15 : vector<8x128xf32>
    %17 = arith.negf %16 : vector<8x128xf32>
    %18 = math.exp %17 : vector<8x128xf32>
    %cst_13 = arith.constant 1.000000e+00 : f32
    %19 = vector.broadcast %cst_13 : f32 to vector<8x128xf32>
    %20 = arith.addf %19, %18 : vector<8x128xf32>
    %21 = arith.divf %19, %20 : vector<8x128xf32>
    %22 = vector.extract_strided_slice %10 {offsets = [0, 128], sizes = [8, 128], strides = [1, 1]} : vector<8x384xf32> to vector<8x128xf32>
    %23 = vector.extract_strided_slice %13 {offsets = [0, 128], sizes = [8, 128], strides = [1, 1]} : vector<8x384xf32> to vector<8x128xf32>
    %24 = arith.addf %22, %23 : vector<8x128xf32>
    %25 = arith.negf %24 : vector<8x128xf32>
    %26 = math.exp %25 : vector<8x128xf32>
    %cst_14 = arith.constant 1.000000e+00 : f32
    %27 = vector.broadcast %cst_14 : f32 to vector<8x128xf32>
    %28 = arith.addf %27, %26 : vector<8x128xf32>
    %29 = arith.divf %27, %28 : vector<8x128xf32>
    %30 = vector.extract_strided_slice %10 {offsets = [0, 256], sizes = [8, 128], strides = [1, 1]} : vector<8x384xf32> to vector<8x128xf32>
    %31 = vector.extract_strided_slice %13 {offsets = [0, 256], sizes = [8, 128], strides = [1, 1]} : vector<8x384xf32> to vector<8x128xf32>
    %32 = arith.mulf %21, %31 : vector<8x128xf32>
    %33 = arith.addf %30, %32 : vector<8x128xf32>
    %34 = math.tanh %33 : vector<8x128xf32>
    %cst_15 = arith.constant 1.000000e+00 : f32
    %35 = vector.broadcast %cst_15 : f32 to vector<8x128xf32>
    %36 = arith.subf %35, %29 : vector<8x128xf32>
    %37 = arith.mulf %36, %34 : vector<8x128xf32>
    %38 = arith.mulf %29, %9 : vector<8x128xf32>
    %39 = arith.addf %37, %38 : vector<8x128xf32>
    %cst_16 = arith.constant 0.000000e+00 : f32
    %40 = vector.broadcast %cst_16 : f32 to vector<8x128xf32>
    %41 = arith.cmpf ogt, %8, %40 : vector<8x128xf32>
    %42 = arith.select %41, %39, %9 : vector<8x128xi1>, vector<8x128xf32>
    %43 = vector.extract_strided_slice %5 {offsets = [8, 0], sizes = [8, 384], strides = [1, 1]} : vector<64x384xf32> to vector<8x384xf32>
    %cst_17 = arith.constant dense<0.000000e+00> : vector<8x384xf32>
    %44 = tpu.matmul %42, %6, %cst_17 {dimension_numbers = #tpu.dot_dimension_numbers<[1], [0], [0], [1], [0, 0, 1, 1], [], []>} : vector<8x128xf32>, vector<128x384xf32>, vector<8x384xf32> -> vector<8x384xf32>
    %45 = vector.broadcast %7 : vector<1x384xf32> to vector<8x384xf32>
    %46 = arith.addf %44, %45 : vector<8x384xf32>
    %47 = vector.extract_strided_slice %43 {offsets = [0, 0], sizes = [8, 128], strides = [1, 1]} : vector<8x384xf32> to vector<8x128xf32>
    %48 = vector.extract_strided_slice %46 {offsets = [0, 0], sizes = [8, 128], strides = [1, 1]} : vector<8x384xf32> to vector<8x128xf32>
    %49 = arith.addf %47, %48 : vector<8x128xf32>
    %50 = arith.negf %49 : vector<8x128xf32>
    %51 = math.exp %50 : vector<8x128xf32>
    %cst_18 = arith.constant 1.000000e+00 : f32
    %52 = vector.broadcast %cst_18 : f32 to vector<8x128xf32>
    %53 = arith.addf %52, %51 : vector<8x128xf32>
    %54 = arith.divf %52, %53 : vector<8x128xf32>
    %55 = vector.extract_strided_slice %43 {offsets = [0, 128], sizes = [8, 128], strides = [1, 1]} : vector<8x384xf32> to vector<8x128xf32>
    %56 = vector.extract_strided_slice %46 {offsets = [0, 128], sizes = [8, 128], strides = [1, 1]} : vector<8x384xf32> to vector<8x128xf32>
    %57 = arith.addf %55, %56 : vector<8x128xf32>
    %58 = arith.negf %57 : vector<8x128xf32>
    %59 = math.exp %58 : vector<8x128xf32>
    %cst_19 = arith.constant 1.000000e+00 : f32
    %60 = vector.broadcast %cst_19 : f32 to vector<8x128xf32>
    %61 = arith.addf %60, %59 : vector<8x128xf32>
    %62 = arith.divf %60, %61 : vector<8x128xf32>
    %63 = vector.extract_strided_slice %43 {offsets = [0, 256], sizes = [8, 128], strides = [1, 1]} : vector<8x384xf32> to vector<8x128xf32>
    %64 = vector.extract_strided_slice %46 {offsets = [0, 256], sizes = [8, 128], strides = [1, 1]} : vector<8x384xf32> to vector<8x128xf32>
    %65 = arith.mulf %54, %64 : vector<8x128xf32>
    %66 = arith.addf %63, %65 : vector<8x128xf32>
    %67 = math.tanh %66 : vector<8x128xf32>
    %cst_20 = arith.constant 1.000000e+00 : f32
    %68 = vector.broadcast %cst_20 : f32 to vector<8x128xf32>
    %69 = arith.subf %68, %62 : vector<8x128xf32>
    %70 = arith.mulf %69, %67 : vector<8x128xf32>
    %71 = arith.mulf %62, %42 : vector<8x128xf32>
    %72 = arith.addf %70, %71 : vector<8x128xf32>
    %cst_21 = arith.constant 1.000000e+00 : f32
    %73 = vector.broadcast %cst_21 : f32 to vector<8x128xf32>
    %74 = arith.cmpf ogt, %8, %73 : vector<8x128xf32>
    %75 = arith.select %74, %72, %42 : vector<8x128xi1>, vector<8x128xf32>
    %76 = vector.extract_strided_slice %5 {offsets = [16, 0], sizes = [8, 384], strides = [1, 1]} : vector<64x384xf32> to vector<8x384xf32>
    %cst_22 = arith.constant dense<0.000000e+00> : vector<8x384xf32>
    %77 = tpu.matmul %75, %6, %cst_22 {dimension_numbers = #tpu.dot_dimension_numbers<[1], [0], [0], [1], [0, 0, 1, 1], [], []>} : vector<8x128xf32>, vector<128x384xf32>, vector<8x384xf32> -> vector<8x384xf32>
    %78 = vector.broadcast %7 : vector<1x384xf32> to vector<8x384xf32>
    %79 = arith.addf %77, %78 : vector<8x384xf32>
    %80 = vector.extract_strided_slice %76 {offsets = [0, 0], sizes = [8, 128], strides = [1, 1]} : vector<8x384xf32> to vector<8x128xf32>
    %81 = vector.extract_strided_slice %79 {offsets = [0, 0], sizes = [8, 128], strides = [1, 1]} : vector<8x384xf32> to vector<8x128xf32>
    %82 = arith.addf %80, %81 : vector<8x128xf32>
    %83 = arith.negf %82 : vector<8x128xf32>
    %84 = math.exp %83 : vector<8x128xf32>
    %cst_23 = arith.constant 1.000000e+00 : f32
    %85 = vector.broadcast %cst_23 : f32 to vector<8x128xf32>
    %86 = arith.addf %85, %84 : vector<8x128xf32>
    %87 = arith.divf %85, %86 : vector<8x128xf32>
    %88 = vector.extract_strided_slice %76 {offsets = [0, 128], sizes = [8, 128], strides = [1, 1]} : vector<8x384xf32> to vector<8x128xf32>
    %89 = vector.extract_strided_slice %79 {offsets = [0, 128], sizes = [8, 128], strides = [1, 1]} : vector<8x384xf32> to vector<8x128xf32>
    %90 = arith.addf %88, %89 : vector<8x128xf32>
    %91 = arith.negf %90 : vector<8x128xf32>
    %92 = math.exp %91 : vector<8x128xf32>
    %cst_24 = arith.constant 1.000000e+00 : f32
    %93 = vector.broadcast %cst_24 : f32 to vector<8x128xf32>
    %94 = arith.addf %93, %92 : vector<8x128xf32>
    %95 = arith.divf %93, %94 : vector<8x128xf32>
    %96 = vector.extract_strided_slice %76 {offsets = [0, 256], sizes = [8, 128], strides = [1, 1]} : vector<8x384xf32> to vector<8x128xf32>
    %97 = vector.extract_strided_slice %79 {offsets = [0, 256], sizes = [8, 128], strides = [1, 1]} : vector<8x384xf32> to vector<8x128xf32>
    %98 = arith.mulf %87, %97 : vector<8x128xf32>
    %99 = arith.addf %96, %98 : vector<8x128xf32>
    %100 = math.tanh %99 : vector<8x128xf32>
    %cst_25 = arith.constant 1.000000e+00 : f32
    %101 = vector.broadcast %cst_25 : f32 to vector<8x128xf32>
    %102 = arith.subf %101, %95 : vector<8x128xf32>
    %103 = arith.mulf %102, %100 : vector<8x128xf32>
    %104 = arith.mulf %95, %75 : vector<8x128xf32>
    %105 = arith.addf %103, %104 : vector<8x128xf32>
    %cst_26 = arith.constant 2.000000e+00 : f32
    %106 = vector.broadcast %cst_26 : f32 to vector<8x128xf32>
    %107 = arith.cmpf ogt, %8, %106 : vector<8x128xf32>
    %108 = arith.select %107, %105, %75 : vector<8x128xi1>, vector<8x128xf32>
    %109 = vector.extract_strided_slice %5 {offsets = [24, 0], sizes = [8, 384], strides = [1, 1]} : vector<64x384xf32> to vector<8x384xf32>
    %cst_27 = arith.constant dense<0.000000e+00> : vector<8x384xf32>
    %110 = tpu.matmul %108, %6, %cst_27 {dimension_numbers = #tpu.dot_dimension_numbers<[1], [0], [0], [1], [0, 0, 1, 1], [], []>} : vector<8x128xf32>, vector<128x384xf32>, vector<8x384xf32> -> vector<8x384xf32>
    %111 = vector.broadcast %7 : vector<1x384xf32> to vector<8x384xf32>
    %112 = arith.addf %110, %111 : vector<8x384xf32>
    %113 = vector.extract_strided_slice %109 {offsets = [0, 0], sizes = [8, 128], strides = [1, 1]} : vector<8x384xf32> to vector<8x128xf32>
    %114 = vector.extract_strided_slice %112 {offsets = [0, 0], sizes = [8, 128], strides = [1, 1]} : vector<8x384xf32> to vector<8x128xf32>
    %115 = arith.addf %113, %114 : vector<8x128xf32>
    %116 = arith.negf %115 : vector<8x128xf32>
    %117 = math.exp %116 : vector<8x128xf32>
    %cst_28 = arith.constant 1.000000e+00 : f32
    %118 = vector.broadcast %cst_28 : f32 to vector<8x128xf32>
    %119 = arith.addf %118, %117 : vector<8x128xf32>
    %120 = arith.divf %118, %119 : vector<8x128xf32>
    %121 = vector.extract_strided_slice %109 {offsets = [0, 128], sizes = [8, 128], strides = [1, 1]} : vector<8x384xf32> to vector<8x128xf32>
    %122 = vector.extract_strided_slice %112 {offsets = [0, 128], sizes = [8, 128], strides = [1, 1]} : vector<8x384xf32> to vector<8x128xf32>
    %123 = arith.addf %121, %122 : vector<8x128xf32>
    %124 = arith.negf %123 : vector<8x128xf32>
    %125 = math.exp %124 : vector<8x128xf32>
    %cst_29 = arith.constant 1.000000e+00 : f32
    %126 = vector.broadcast %cst_29 : f32 to vector<8x128xf32>
    %127 = arith.addf %126, %125 : vector<8x128xf32>
    %128 = arith.divf %126, %127 : vector<8x128xf32>
    %129 = vector.extract_strided_slice %109 {offsets = [0, 256], sizes = [8, 128], strides = [1, 1]} : vector<8x384xf32> to vector<8x128xf32>
    %130 = vector.extract_strided_slice %112 {offsets = [0, 256], sizes = [8, 128], strides = [1, 1]} : vector<8x384xf32> to vector<8x128xf32>
    %131 = arith.mulf %120, %130 : vector<8x128xf32>
    %132 = arith.addf %129, %131 : vector<8x128xf32>
    %133 = math.tanh %132 : vector<8x128xf32>
    %cst_30 = arith.constant 1.000000e+00 : f32
    %134 = vector.broadcast %cst_30 : f32 to vector<8x128xf32>
    %135 = arith.subf %134, %128 : vector<8x128xf32>
    %136 = arith.mulf %135, %133 : vector<8x128xf32>
    %137 = arith.mulf %128, %108 : vector<8x128xf32>
    %138 = arith.addf %136, %137 : vector<8x128xf32>
    %cst_31 = arith.constant 3.000000e+00 : f32
    %139 = vector.broadcast %cst_31 : f32 to vector<8x128xf32>
    %140 = arith.cmpf ogt, %8, %139 : vector<8x128xf32>
    %141 = arith.select %140, %138, %108 : vector<8x128xi1>, vector<8x128xf32>
    %142 = vector.extract_strided_slice %5 {offsets = [32, 0], sizes = [8, 384], strides = [1, 1]} : vector<64x384xf32> to vector<8x384xf32>
    %cst_32 = arith.constant dense<0.000000e+00> : vector<8x384xf32>
    %143 = tpu.matmul %141, %6, %cst_32 {dimension_numbers = #tpu.dot_dimension_numbers<[1], [0], [0], [1], [0, 0, 1, 1], [], []>} : vector<8x128xf32>, vector<128x384xf32>, vector<8x384xf32> -> vector<8x384xf32>
    %144 = vector.broadcast %7 : vector<1x384xf32> to vector<8x384xf32>
    %145 = arith.addf %143, %144 : vector<8x384xf32>
    %146 = vector.extract_strided_slice %142 {offsets = [0, 0], sizes = [8, 128], strides = [1, 1]} : vector<8x384xf32> to vector<8x128xf32>
    %147 = vector.extract_strided_slice %145 {offsets = [0, 0], sizes = [8, 128], strides = [1, 1]} : vector<8x384xf32> to vector<8x128xf32>
    %148 = arith.addf %146, %147 : vector<8x128xf32>
    %149 = arith.negf %148 : vector<8x128xf32>
    %150 = math.exp %149 : vector<8x128xf32>
    %cst_33 = arith.constant 1.000000e+00 : f32
    %151 = vector.broadcast %cst_33 : f32 to vector<8x128xf32>
    %152 = arith.addf %151, %150 : vector<8x128xf32>
    %153 = arith.divf %151, %152 : vector<8x128xf32>
    %154 = vector.extract_strided_slice %142 {offsets = [0, 128], sizes = [8, 128], strides = [1, 1]} : vector<8x384xf32> to vector<8x128xf32>
    %155 = vector.extract_strided_slice %145 {offsets = [0, 128], sizes = [8, 128], strides = [1, 1]} : vector<8x384xf32> to vector<8x128xf32>
    %156 = arith.addf %154, %155 : vector<8x128xf32>
    %157 = arith.negf %156 : vector<8x128xf32>
    %158 = math.exp %157 : vector<8x128xf32>
    %cst_34 = arith.constant 1.000000e+00 : f32
    %159 = vector.broadcast %cst_34 : f32 to vector<8x128xf32>
    %160 = arith.addf %159, %158 : vector<8x128xf32>
    %161 = arith.divf %159, %160 : vector<8x128xf32>
    %162 = vector.extract_strided_slice %142 {offsets = [0, 256], sizes = [8, 128], strides = [1, 1]} : vector<8x384xf32> to vector<8x128xf32>
    %163 = vector.extract_strided_slice %145 {offsets = [0, 256], sizes = [8, 128], strides = [1, 1]} : vector<8x384xf32> to vector<8x128xf32>
    %164 = arith.mulf %153, %163 : vector<8x128xf32>
    %165 = arith.addf %162, %164 : vector<8x128xf32>
    %166 = math.tanh %165 : vector<8x128xf32>
    %cst_35 = arith.constant 1.000000e+00 : f32
    %167 = vector.broadcast %cst_35 : f32 to vector<8x128xf32>
    %168 = arith.subf %167, %161 : vector<8x128xf32>
    %169 = arith.mulf %168, %166 : vector<8x128xf32>
    %170 = arith.mulf %161, %141 : vector<8x128xf32>
    %171 = arith.addf %169, %170 : vector<8x128xf32>
    %cst_36 = arith.constant 4.000000e+00 : f32
    %172 = vector.broadcast %cst_36 : f32 to vector<8x128xf32>
    %173 = arith.cmpf ogt, %8, %172 : vector<8x128xf32>
    %174 = arith.select %173, %171, %141 : vector<8x128xi1>, vector<8x128xf32>
    %175 = vector.extract_strided_slice %5 {offsets = [40, 0], sizes = [8, 384], strides = [1, 1]} : vector<64x384xf32> to vector<8x384xf32>
    %cst_37 = arith.constant dense<0.000000e+00> : vector<8x384xf32>
    %176 = tpu.matmul %174, %6, %cst_37 {dimension_numbers = #tpu.dot_dimension_numbers<[1], [0], [0], [1], [0, 0, 1, 1], [], []>} : vector<8x128xf32>, vector<128x384xf32>, vector<8x384xf32> -> vector<8x384xf32>
    %177 = vector.broadcast %7 : vector<1x384xf32> to vector<8x384xf32>
    %178 = arith.addf %176, %177 : vector<8x384xf32>
    %179 = vector.extract_strided_slice %175 {offsets = [0, 0], sizes = [8, 128], strides = [1, 1]} : vector<8x384xf32> to vector<8x128xf32>
    %180 = vector.extract_strided_slice %178 {offsets = [0, 0], sizes = [8, 128], strides = [1, 1]} : vector<8x384xf32> to vector<8x128xf32>
    %181 = arith.addf %179, %180 : vector<8x128xf32>
    %182 = arith.negf %181 : vector<8x128xf32>
    %183 = math.exp %182 : vector<8x128xf32>
    %cst_38 = arith.constant 1.000000e+00 : f32
    %184 = vector.broadcast %cst_38 : f32 to vector<8x128xf32>
    %185 = arith.addf %184, %183 : vector<8x128xf32>
    %186 = arith.divf %184, %185 : vector<8x128xf32>
    %187 = vector.extract_strided_slice %175 {offsets = [0, 128], sizes = [8, 128], strides = [1, 1]} : vector<8x384xf32> to vector<8x128xf32>
    %188 = vector.extract_strided_slice %178 {offsets = [0, 128], sizes = [8, 128], strides = [1, 1]} : vector<8x384xf32> to vector<8x128xf32>
    %189 = arith.addf %187, %188 : vector<8x128xf32>
    %190 = arith.negf %189 : vector<8x128xf32>
    %191 = math.exp %190 : vector<8x128xf32>
    %cst_39 = arith.constant 1.000000e+00 : f32
    %192 = vector.broadcast %cst_39 : f32 to vector<8x128xf32>
    %193 = arith.addf %192, %191 : vector<8x128xf32>
    %194 = arith.divf %192, %193 : vector<8x128xf32>
    %195 = vector.extract_strided_slice %175 {offsets = [0, 256], sizes = [8, 128], strides = [1, 1]} : vector<8x384xf32> to vector<8x128xf32>
    %196 = vector.extract_strided_slice %178 {offsets = [0, 256], sizes = [8, 128], strides = [1, 1]} : vector<8x384xf32> to vector<8x128xf32>
    %197 = arith.mulf %186, %196 : vector<8x128xf32>
    %198 = arith.addf %195, %197 : vector<8x128xf32>
    %199 = math.tanh %198 : vector<8x128xf32>
    %cst_40 = arith.constant 1.000000e+00 : f32
    %200 = vector.broadcast %cst_40 : f32 to vector<8x128xf32>
    %201 = arith.subf %200, %194 : vector<8x128xf32>
    %202 = arith.mulf %201, %199 : vector<8x128xf32>
    %203 = arith.mulf %194, %174 : vector<8x128xf32>
    %204 = arith.addf %202, %203 : vector<8x128xf32>
    %cst_41 = arith.constant 5.000000e+00 : f32
    %205 = vector.broadcast %cst_41 : f32 to vector<8x128xf32>
    %206 = arith.cmpf ogt, %8, %205 : vector<8x128xf32>
    %207 = arith.select %206, %204, %174 : vector<8x128xi1>, vector<8x128xf32>
    %208 = vector.extract_strided_slice %5 {offsets = [48, 0], sizes = [8, 384], strides = [1, 1]} : vector<64x384xf32> to vector<8x384xf32>
    %cst_42 = arith.constant dense<0.000000e+00> : vector<8x384xf32>
    %209 = tpu.matmul %207, %6, %cst_42 {dimension_numbers = #tpu.dot_dimension_numbers<[1], [0], [0], [1], [0, 0, 1, 1], [], []>} : vector<8x128xf32>, vector<128x384xf32>, vector<8x384xf32> -> vector<8x384xf32>
    %210 = vector.broadcast %7 : vector<1x384xf32> to vector<8x384xf32>
    %211 = arith.addf %209, %210 : vector<8x384xf32>
    %212 = vector.extract_strided_slice %208 {offsets = [0, 0], sizes = [8, 128], strides = [1, 1]} : vector<8x384xf32> to vector<8x128xf32>
    %213 = vector.extract_strided_slice %211 {offsets = [0, 0], sizes = [8, 128], strides = [1, 1]} : vector<8x384xf32> to vector<8x128xf32>
    %214 = arith.addf %212, %213 : vector<8x128xf32>
    %215 = arith.negf %214 : vector<8x128xf32>
    %216 = math.exp %215 : vector<8x128xf32>
    %cst_43 = arith.constant 1.000000e+00 : f32
    %217 = vector.broadcast %cst_43 : f32 to vector<8x128xf32>
    %218 = arith.addf %217, %216 : vector<8x128xf32>
    %219 = arith.divf %217, %218 : vector<8x128xf32>
    %220 = vector.extract_strided_slice %208 {offsets = [0, 128], sizes = [8, 128], strides = [1, 1]} : vector<8x384xf32> to vector<8x128xf32>
    %221 = vector.extract_strided_slice %211 {offsets = [0, 128], sizes = [8, 128], strides = [1, 1]} : vector<8x384xf32> to vector<8x128xf32>
    %222 = arith.addf %220, %221 : vector<8x128xf32>
    %223 = arith.negf %222 : vector<8x128xf32>
    %224 = math.exp %223 : vector<8x128xf32>
    %cst_44 = arith.constant 1.000000e+00 : f32
    %225 = vector.broadcast %cst_44 : f32 to vector<8x128xf32>
    %226 = arith.addf %225, %224 : vector<8x128xf32>
    %227 = arith.divf %225, %226 : vector<8x128xf32>
    %228 = vector.extract_strided_slice %208 {offsets = [0, 256], sizes = [8, 128], strides = [1, 1]} : vector<8x384xf32> to vector<8x128xf32>
    %229 = vector.extract_strided_slice %211 {offsets = [0, 256], sizes = [8, 128], strides = [1, 1]} : vector<8x384xf32> to vector<8x128xf32>
    %230 = arith.mulf %219, %229 : vector<8x128xf32>
    %231 = arith.addf %228, %230 : vector<8x128xf32>
    %232 = math.tanh %231 : vector<8x128xf32>
    %cst_45 = arith.constant 1.000000e+00 : f32
    %233 = vector.broadcast %cst_45 : f32 to vector<8x128xf32>
    %234 = arith.subf %233, %227 : vector<8x128xf32>
    %235 = arith.mulf %234, %232 : vector<8x128xf32>
    %236 = arith.mulf %227, %207 : vector<8x128xf32>
    %237 = arith.addf %235, %236 : vector<8x128xf32>
    %cst_46 = arith.constant 6.000000e+00 : f32
    %238 = vector.broadcast %cst_46 : f32 to vector<8x128xf32>
    %239 = arith.cmpf ogt, %8, %238 : vector<8x128xf32>
    %240 = arith.select %239, %237, %207 : vector<8x128xi1>, vector<8x128xf32>
    %241 = vector.extract_strided_slice %5 {offsets = [56, 0], sizes = [8, 384], strides = [1, 1]} : vector<64x384xf32> to vector<8x384xf32>
    %cst_47 = arith.constant dense<0.000000e+00> : vector<8x384xf32>
    %242 = tpu.matmul %240, %6, %cst_47 {dimension_numbers = #tpu.dot_dimension_numbers<[1], [0], [0], [1], [0, 0, 1, 1], [], []>} : vector<8x128xf32>, vector<128x384xf32>, vector<8x384xf32> -> vector<8x384xf32>
    %243 = vector.broadcast %7 : vector<1x384xf32> to vector<8x384xf32>
    %244 = arith.addf %242, %243 : vector<8x384xf32>
    %245 = vector.extract_strided_slice %241 {offsets = [0, 0], sizes = [8, 128], strides = [1, 1]} : vector<8x384xf32> to vector<8x128xf32>
    %246 = vector.extract_strided_slice %244 {offsets = [0, 0], sizes = [8, 128], strides = [1, 1]} : vector<8x384xf32> to vector<8x128xf32>
    %247 = arith.addf %245, %246 : vector<8x128xf32>
    %248 = arith.negf %247 : vector<8x128xf32>
    %249 = math.exp %248 : vector<8x128xf32>
    %cst_48 = arith.constant 1.000000e+00 : f32
    %250 = vector.broadcast %cst_48 : f32 to vector<8x128xf32>
    %251 = arith.addf %250, %249 : vector<8x128xf32>
    %252 = arith.divf %250, %251 : vector<8x128xf32>
    %253 = vector.extract_strided_slice %241 {offsets = [0, 128], sizes = [8, 128], strides = [1, 1]} : vector<8x384xf32> to vector<8x128xf32>
    %254 = vector.extract_strided_slice %244 {offsets = [0, 128], sizes = [8, 128], strides = [1, 1]} : vector<8x384xf32> to vector<8x128xf32>
    %255 = arith.addf %253, %254 : vector<8x128xf32>
    %256 = arith.negf %255 : vector<8x128xf32>
    %257 = math.exp %256 : vector<8x128xf32>
    %cst_49 = arith.constant 1.000000e+00 : f32
    %258 = vector.broadcast %cst_49 : f32 to vector<8x128xf32>
    %259 = arith.addf %258, %257 : vector<8x128xf32>
    %260 = arith.divf %258, %259 : vector<8x128xf32>
    %261 = vector.extract_strided_slice %241 {offsets = [0, 256], sizes = [8, 128], strides = [1, 1]} : vector<8x384xf32> to vector<8x128xf32>
    %262 = vector.extract_strided_slice %244 {offsets = [0, 256], sizes = [8, 128], strides = [1, 1]} : vector<8x384xf32> to vector<8x128xf32>
    %263 = arith.mulf %252, %262 : vector<8x128xf32>
    %264 = arith.addf %261, %263 : vector<8x128xf32>
    %265 = math.tanh %264 : vector<8x128xf32>
    %cst_50 = arith.constant 1.000000e+00 : f32
    %266 = vector.broadcast %cst_50 : f32 to vector<8x128xf32>
    %267 = arith.subf %266, %260 : vector<8x128xf32>
    %268 = arith.mulf %267, %265 : vector<8x128xf32>
    %269 = arith.mulf %260, %240 : vector<8x128xf32>
    %270 = arith.addf %268, %269 : vector<8x128xf32>
    %cst_51 = arith.constant 7.000000e+00 : f32
    %271 = vector.broadcast %cst_51 : f32 to vector<8x128xf32>
    %272 = arith.cmpf ogt, %8, %271 : vector<8x128xf32>
    %273 = arith.select %272, %270, %240 : vector<8x128xi1>, vector<8x128xf32>
    %274 = tpu.iota {dimensions = array<i32: 1>} : vector<8x128xi32>
    %cst_52 = arith.constant 0.000000e+00 : f32
    %275 = vector.broadcast %cst_52 : f32 to vector<8x128xf32>
    %c0_53 = arith.constant 0 : index
    %c0_54 = arith.constant 0 : index
    %c0_55 = arith.constant 0 : index
    %276 = vector.load %arg6[%c0_53, %c0_54, %c0_55] : memref<4x8x8xf32, #tpu.memory_space<vmem>>, vector<1x8x8xf32>
    %277 = vector.shape_cast %276 : vector<1x8x8xf32> to vector<8x8xf32>
    %cst_56 = arith.constant dense<0.000000e+00> : vector<8x128xf32>
    %278 = tpu.matmul %277, %273, %cst_56 {dimension_numbers = #tpu.dot_dimension_numbers<[1], [0], [0], [1], [0, 0, 1, 1], [], []>} : vector<8x8xf32>, vector<8x128xf32>, vector<8x128xf32> -> vector<8x128xf32>
    %c0_i32 = arith.constant 0 : i32
    %279 = vector.broadcast %c0_i32 : i32 to vector<8x128xi32>
    %280 = arith.cmpi sge, %274, %279 : vector<8x128xi32>
    %c8_i32 = arith.constant 8 : i32
    %281 = vector.broadcast %c8_i32 : i32 to vector<8x128xi32>
    %282 = arith.cmpi slt, %274, %281 : vector<8x128xi32>
    %283 = arith.andi %280, %282 : vector<8x128xi1>
    %284 = arith.select %283, %278, %275 : vector<8x128xi1>, vector<8x128xf32>
    %c1 = arith.constant 1 : index
    %c0_57 = arith.constant 0 : index
    %c0_58 = arith.constant 0 : index
    %285 = vector.load %arg6[%c1, %c0_57, %c0_58] : memref<4x8x8xf32, #tpu.memory_space<vmem>>, vector<1x8x8xf32>
    %286 = vector.shape_cast %285 : vector<1x8x8xf32> to vector<8x8xf32>
    %cst_59 = arith.constant dense<0.000000e+00> : vector<8x128xf32>
    %287 = tpu.matmul %286, %273, %cst_59 {dimension_numbers = #tpu.dot_dimension_numbers<[1], [0], [0], [1], [0, 0, 1, 1], [], []>} : vector<8x8xf32>, vector<8x128xf32>, vector<8x128xf32> -> vector<8x128xf32>
    %c8_i32_60 = arith.constant 8 : i32
    %288 = vector.broadcast %c8_i32_60 : i32 to vector<8x128xi32>
    %289 = arith.cmpi sge, %274, %288 : vector<8x128xi32>
    %c16_i32 = arith.constant 16 : i32
    %290 = vector.broadcast %c16_i32 : i32 to vector<8x128xi32>
    %291 = arith.cmpi slt, %274, %290 : vector<8x128xi32>
    %292 = arith.andi %289, %291 : vector<8x128xi1>
    %293 = arith.select %292, %287, %284 : vector<8x128xi1>, vector<8x128xf32>
    %c2 = arith.constant 2 : index
    %c0_61 = arith.constant 0 : index
    %c0_62 = arith.constant 0 : index
    %294 = vector.load %arg6[%c2, %c0_61, %c0_62] : memref<4x8x8xf32, #tpu.memory_space<vmem>>, vector<1x8x8xf32>
    %295 = vector.shape_cast %294 : vector<1x8x8xf32> to vector<8x8xf32>
    %cst_63 = arith.constant dense<0.000000e+00> : vector<8x128xf32>
    %296 = tpu.matmul %295, %273, %cst_63 {dimension_numbers = #tpu.dot_dimension_numbers<[1], [0], [0], [1], [0, 0, 1, 1], [], []>} : vector<8x8xf32>, vector<8x128xf32>, vector<8x128xf32> -> vector<8x128xf32>
    %c16_i32_64 = arith.constant 16 : i32
    %297 = vector.broadcast %c16_i32_64 : i32 to vector<8x128xi32>
    %298 = arith.cmpi sge, %274, %297 : vector<8x128xi32>
    %c24_i32 = arith.constant 24 : i32
    %299 = vector.broadcast %c24_i32 : i32 to vector<8x128xi32>
    %300 = arith.cmpi slt, %274, %299 : vector<8x128xi32>
    %301 = arith.andi %298, %300 : vector<8x128xi1>
    %302 = arith.select %301, %296, %293 : vector<8x128xi1>, vector<8x128xf32>
    %c3 = arith.constant 3 : index
    %c0_65 = arith.constant 0 : index
    %c0_66 = arith.constant 0 : index
    %303 = vector.load %arg6[%c3, %c0_65, %c0_66] : memref<4x8x8xf32, #tpu.memory_space<vmem>>, vector<1x8x8xf32>
    %304 = vector.shape_cast %303 : vector<1x8x8xf32> to vector<8x8xf32>
    %cst_67 = arith.constant dense<0.000000e+00> : vector<8x128xf32>
    %305 = tpu.matmul %304, %273, %cst_67 {dimension_numbers = #tpu.dot_dimension_numbers<[1], [0], [0], [1], [0, 0, 1, 1], [], []>} : vector<8x8xf32>, vector<8x128xf32>, vector<8x128xf32> -> vector<8x128xf32>
    %c24_i32_68 = arith.constant 24 : i32
    %306 = vector.broadcast %c24_i32_68 : i32 to vector<8x128xi32>
    %307 = arith.cmpi sge, %274, %306 : vector<8x128xi32>
    %c32_i32 = arith.constant 32 : i32
    %308 = vector.broadcast %c32_i32 : i32 to vector<8x128xi32>
    %309 = arith.cmpi slt, %274, %308 : vector<8x128xi32>
    %310 = arith.andi %307, %309 : vector<8x128xi1>
    %311 = arith.select %310, %305, %302 : vector<8x128xi1>, vector<8x128xf32>
    %c0_69 = arith.constant 0 : index
    %c0_70 = arith.constant 0 : index
    %312 = vector.load %arg7[%c0_69, %c0_70] : memref<8x128xf32, #tpu.memory_space<vmem>>, vector<8x128xf32>
    tpu.vector_store %arg7[%c0_69, %c0_70], %311 {strides = array<i32>} : memref<8x128xf32, #tpu.memory_space<vmem>>, vector<8x128xf32>,
    return
  }
}

</mosaic_0001>

<llo_original>
// kernel: tpu_custom_call.1
$region0: #{tpu_custom_call.1}
  #allocation0 [shape = 'u32[]', space=smem, size = 0x4, offset = 0x4, fixed_abs, tag = 'smem constant byte address 0x4 - core index']
  #allocation1 [shape = 'u32[144,128]{1,0:T(1,128)}', space=vmem, size = 0x12000, scoped, tag = 'internal scratch']
  %s0 = inlined_call_operand.hbm [shape: f32[64,96], index: 0, kind: input, shape index: {}]
  %s1 = inlined_call_operand.hbm [shape: f32[8,128], index: 1, kind: input, shape index: {}]
  %s2 = inlined_call_operand.hbm [shape: f32[96,384], index: 2, kind: input, shape index: {}]
  %s3 = inlined_call_operand.vmem [shape: f32[1,384], index: 3, kind: input, shape index: {}]
  %s4 = inlined_call_operand.hbm [shape: f32[128,384], index: 4, kind: input, shape index: {}]
  %s5 = inlined_call_operand.vmem [shape: f32[1,384], index: 5, kind: input, shape index: {}]
  %s6 = inlined_call_operand.hbm [shape: f32[4,8,8], index: 6, kind: input, shape index: {}]
  %s7 = inlined_call_operand.hbm [shape: f32[8,128], index: 7, kind: output, shape index: {}]
  %s8 = sld [smem:[#allocation0]]
  $region58: #{tpu_custom_call.1} parent=0
    _
  %s10 = ssub.s32 1, %s8
  %s11 = scalar_select 0, %s10, %s8
  $region1: #{tpu_custom_call.1} parent=0
    #allocation2 [shape = 'u8[32768]{0}', space=vmem, size = 0x8000, scoped, tag = 'input window, operand 0, single buffered']
    #allocation3 [shape = 's32[1]{0}', space=sflag, size = 0x4, scoped, tag = 'scoped memory for tpu_custom_call.1']
    #allocation4 [shape = 's32[1]{0}', space=sflag, size = 0x4, scoped, tag = 'scoped memory for tpu_custom_call.1']
    #allocation5 [shape = 'u8[4096]{0}', space=vmem, size = 0x1000, scoped, tag = 'input window, operand 1, single buffered']
    #allocation6 [shape = 's32[1]{0}', space=sflag, size = 0x4, scoped, tag = 'scoped memory for tpu_custom_call.1']
    #allocation7 [shape = 'u8[147456]{0}', space=vmem, size = 0x24000, scoped, tag = 'input window, operand 2, single buffered']
    #allocation8 [shape = 'u8[196608]{0}', space=vmem, size = 0x30000, scoped, tag = 'input window, operand 4, single buffered']
    #allocation9 [shape = 's32[1]{0}', space=sflag, size = 0x4, scoped, tag = 'scoped memory for tpu_custom_call.1']
    #allocation10 [shape = 'u8[16384]{0}', space=vmem, size = 0x4000, scoped, tag = 'input window, operand 6, single buffered']
    #allocation11 [shape = 'u8[4096]{0}', space=vmem, size = 0x1000, scoped, tag = 'output window, operand 0, single buffered']
    %12 = vsyncpa [#allocation3], 0
    %13 = vsyncpa [#allocation6], 0
    %14 = vsyncpa [#allocation9], 0
    %15 = vsyncpa [#allocation4], 0
    // Predicated region
    $region2: #{tpu_custom_call.1} parent=1 // pred_check
      _
    $region3: #{tpu_custom_call.1} parent=1 // pred_check_branch
      %17 = sbr.rel (0) target = $region5
    $region4: #{tpu_custom_call.1} parent=1 // pred_region
      %s19 = ssub.s32 1024, 1024
      %20 = vsyncadd [#allocation3], %s19
      %s21 = sshll.u32 [#allocation2], 4
      %s22 = int_to_ptr.vmem [resolvable:$true] %s21
      %27 = dma.hbm_to_vmem [thread:$0]  %s0, 1024, %s22, [#allocation3], 128, 128, 8
    $region5: #{tpu_custom_call.1} parent=1 // pred_fallthru
      _
    // Predicated region
    $region6: #{tpu_custom_call.1} parent=1 // pred_check
      _
    $region7: #{tpu_custom_call.1} parent=1 // pred_check_branch
      %29 = sbr.rel (0) target = $region9
    $region8: #{tpu_custom_call.1} parent=1 // pred_region
      %s31 = ssub.s32 128, 128
      %32 = vsyncadd [#allocation6], %s31
      %s34 = sshll.u32 [#allocation5], 4
      %s35 = int_to_ptr.vmem [resolvable:$true] %s34
      %37 = dma.hbm_to_vmem [thread:$0]  %s1, 128, %s35, [#allocation6]
    $region9: #{tpu_custom_call.1} parent=1 // pred_fallthru
      _
    // Predicated region
    $region10: #{tpu_custom_call.1} parent=1 // pred_check
      _
    $region11: #{tpu_custom_call.1} parent=1 // pred_check_branch
      %39 = sbr.rel (0) target = $region13
    $region12: #{tpu_custom_call.1} parent=1 // pred_region
      %s41 = ssub.s32 4608, 4608
      %42 = vsyncadd [#allocation6], %s41
      %s43 = sshll.u32 [#allocation7], 4
      %s44 = int_to_ptr.vmem [resolvable:$true] %s43
      %49 = dma.hbm_to_vmem [thread:$0]  %s2, 4608, %s44, [#allocation6], 384, 384, 24
    $region13: #{tpu_custom_call.1} parent=1 // pred_fallthru
      _
    // Predicated region
    $region14: #{tpu_custom_call.1} parent=1 // pred_check
      _
    $region15: #{tpu_custom_call.1} parent=1 // pred_check_branch
      %51 = sbr.rel (0) target = $region17
    $region16: #{tpu_custom_call.1} parent=1 // pred_region
      _
    $region17: #{tpu_custom_call.1} parent=1 // pred_fallthru
      _
    // Predicated region
    $region18: #{tpu_custom_call.1} parent=1 // pred_check
      _
    $region19: #{tpu_custom_call.1} parent=1 // pred_check_branch
      %53 = sbr.rel (0) target = $region21
    $region20: #{tpu_custom_call.1} parent=1 // pred_region
      %s55 = ssub.s32 6144, 6144
      %56 = vsyncadd [#allocation9], %s55
      %s57 = sshll.u32 [#allocation8], 4
      %s58 = int_to_ptr.vmem [resolvable:$true] %s57
      %63 = dma.hbm_to_vmem [thread:$0]  %s4, 6144, %s58, [#allocation9], 384, 384, 24
    $region21: #{tpu_custom_call.1} parent=1 // pred_fallthru
      _
    // Predicated region
    $region22: #{tpu_custom_call.1} parent=1 // pred_check
      _
    $region23: #{tpu_custom_call.1} parent=1 // pred_check_branch
      %65 = sbr.rel (0) target = $region25
    $region24: #{tpu_custom_call.1} parent=1 // pred_region
      _
    $region25: #{tpu_custom_call.1} parent=1 // pred_fallthru
      _
    // Predicated region
    $region26: #{tpu_custom_call.1} parent=1 // pred_check
      _
    $region27: #{tpu_custom_call.1} parent=1 // pred_check_branch
      %67 = sbr.rel (0) target = $region29
    $region28: #{tpu_custom_call.1} parent=1 // pred_region
      %s69 = ssub.s32 512, 512
      %70 = vsyncadd [#allocation9], %s69
      %s71 = sshll.u32 [#allocation10], 4
      %s72 = int_to_ptr.vmem [resolvable:$true] %s71
      %77 = dma.hbm_to_vmem [thread:$0]  %s6, 512, %s72, [#allocation9], 128, 128, 8
    $region29: #{tpu_custom_call.1} parent=1 // pred_fallthru
      _
    // Predicated region
    $region30: #{tpu_custom_call.1} parent=1 // pred_check
      _
    $region31: #{tpu_custom_call.1} parent=1 // pred_check_branch
      %79 = sbr.rel (0) target = $region33
    $region32: #{tpu_custom_call.1} parent=1 // pred_region
      %80 = dma.done [#allocation3], 1024
    $region33: #{tpu_custom_call.1} parent=1 // pred_fallthru
      _
    // Predicated region
    $region34: #{tpu_custom_call.1} parent=1 // pred_check
      _
    $region35: #{tpu_custom_call.1} parent=1 // pred_check_branch
      %82 = sbr.rel (0) target = $region37
    $region36: #{tpu_custom_call.1} parent=1 // pred_region
      %83 = dma.done [#allocation6], 128
    $region37: #{tpu_custom_call.1} parent=1 // pred_fallthru
      _
    // Predicated region
    $region38: #{tpu_custom_call.1} parent=1 // pred_check
      _
    $region39: #{tpu_custom_call.1} parent=1 // pred_check_branch
      %85 = sbr.rel (0) target = $region41
    $region40: #{tpu_custom_call.1} parent=1 // pred_region
      %86 = dma.done [#allocation6], 4608
    $region41: #{tpu_custom_call.1} parent=1 // pred_fallthru
      _
    // Predicated region
    $region42: #{tpu_custom_call.1} parent=1 // pred_check
      _
    $region43: #{tpu_custom_call.1} parent=1 // pred_check_branch
      %88 = sbr.rel (0) target = $region45
    $region44: #{tpu_custom_call.1} parent=1 // pred_region
      %89 = dma.done [#allocation9], 6144
    $region45: #{tpu_custom_call.1} parent=1 // pred_fallthru
      _
    // Predicated region
    $region46: #{tpu_custom_call.1} parent=1 // pred_check
      _
    $region47: #{tpu_custom_call.1} parent=1 // pred_check_branch
      %91 = sbr.rel (0) target = $region49
    $region48: #{tpu_custom_call.1} parent=1 // pred_region
      %92 = dma.done [#allocation9], 512
    $region49: #{tpu_custom_call.1} parent=1 // pred_fallthru
      _
    %v93 = vld [vmem:[#allocation2] sm:$0xff]
    %v94 = vld [vmem:[#allocation2 + $0x8] sm:$0xff]
    %v95 = vld [vmem:[#allocation2 + $0x10] sm:$0xff]
    %v96 = vld [vmem:[#allocation2 + $0x18] sm:$0xff]
    %v97 = vld [vmem:[#allocation2 + $0x20] sm:$0xff]
    %v98 = vld [vmem:[#allocation2 + $0x28] sm:$0xff]
    %v99 = vld [vmem:[#allocation2 + $0x30] sm:$0xff]
    %v100 = vld [vmem:[#allocation2 + $0x38] sm:$0xff]
    %v101 = vld [vmem:[#allocation7] sm:$0xff]
    %v102 = vld [vmem:[#allocation7 + $0x8] sm:$0xff]
    %v103 = vld [vmem:[#allocation7 + $0x10] sm:$0xff]
    %v104 = vld [vmem:[#allocation7 + $0x18] sm:$0xff]
    %v105 = vld [vmem:[#allocation7 + $0x20] sm:$0xff]
    %v106 = vld [vmem:[#allocation7 + $0x28] sm:$0xff]
    %v107 = vld [vmem:[#allocation7 + $0x30] sm:$0xff]
    %v108 = vld [vmem:[#allocation7 + $0x38] sm:$0xff]
    %v109 = vld [vmem:[#allocation7 + $0x40] sm:$0xff]
    %v110 = vld [vmem:[#allocation7 + $0x48] sm:$0xff]
    %v111 = vld [vmem:[#allocation7 + $0x50] sm:$0xff]
    %v112 = vld [vmem:[#allocation7 + $0x58] sm:$0xff]
    %v113 = vld [vmem:[#allocation7 + $0x60] sm:$0xff]
    %v114 = vld [vmem:[#allocation7 + $0x68] sm:$0xff]
    %v115 = vld [vmem:[#allocation7 + $0x70] sm:$0xff]
    %v116 = vld [vmem:[#allocation7 + $0x78] sm:$0xff]
    %v117 = vld [vmem:[#allocation7 + $0x80] sm:$0xff]
    %v118 = vld [vmem:[#allocation7 + $0x88] sm:$0xff]
    %v119 = vld [vmem:[#allocation7 + $0x90] sm:$0xff]
    %v120 = vld [vmem:[#allocation7 + $0x98] sm:$0xff]
    %v121 = vld [vmem:[#allocation7 + $0xa0] sm:$0xff]
    %v122 = vld [vmem:[#allocation7 + $0xa8] sm:$0xff]
    %v123 = vld [vmem:[#allocation7 + $0xb0] sm:$0xff]
    %v124 = vld [vmem:[#allocation7 + $0xb8] sm:$0xff]
    %v125 = vld [vmem:[#allocation7 + $0xc0] sm:$0xff]
    %v126 = vld [vmem:[#allocation7 + $0xc8] sm:$0xff]
    %v127 = vld [vmem:[#allocation7 + $0xd0] sm:$0xff]
    %v128 = vld [vmem:[#allocation7 + $0xd8] sm:$0xff]
    %v129 = vld [vmem:[#allocation7 + $0xe0] sm:$0xff]
    %v130 = vld [vmem:[#allocation7 + $0xe8] sm:$0xff]
    %v131 = vld [vmem:[#allocation7 + $0xf0] sm:$0xff]
    %v132 = vld [vmem:[#allocation7 + $0xf8] sm:$0xff]
    %v133 = vld [vmem:[#allocation7 + $0x100] sm:$0xff]
    %v134 = vld [vmem:[#allocation7 + $0x108] sm:$0xff]
    %v135 = vld [vmem:[#allocation7 + $0x110] sm:$0xff]
    %v136 = vld [vmem:[#allocation7 + $0x118] sm:$0xff]
    %v137 = vld [vmem:[%s3] sm:$0x7]
    %v139 = vlaneseq
    %v140 = vshrl.u32 %v139, 7
    %v141 = vsub.s32 0, %v140
    %v142 = vrot.slane %v137, %v141
    %v143 = vlaneseq
    %v144 = vshrl.u32 %v143, 7
    %v145 = vsub.s32 1, %v144
    %v146 = vrot.slane %v137, %v145
    %v147 = vlaneseq
    %v148 = vshrl.u32 %v147, 7
    %v149 = vsub.s32 2, %v148
    %v150 = vrot.slane %v137, %v149
    %vm154 = vcmask 785408
    %v156 = vsel %vm154, %v93, 0
    %v159 = vsel %vm154, %v94, 0
    %v162 = vsel %vm154, %v95, 0
    %v165 = vsel %vm154, %v96, 0
    %v168 = vsel %vm154, %v97, 0
    %v171 = vsel %vm154, %v98, 0
    %v174 = vsel %vm154, %v99, 0
    %v177 = vsel %vm154, %v100, 0
    %179 = vmatprep.subr.mxu0 %v102
    %180 = vmatpush1.msra.mxu0 %v101
    %181 = vmatprep.subr.mxu0 %v105
    %182 = vmatpush1.msra.mxu0 %v104
    %183 = vmatprep.subr.mxu0 %v108
    %184 = vmatpush1.msra.mxu0 %v107
    %185 = vmatprep.subr.mxu0 %v111
    %186 = vmatpush1.msra.mxu0 %v110
    %187 = vmatprep.subr.mxu0 %v114
    %188 = vmatpush1.msra.mxu0 %v113
    %189 = vmatprep.subr.mxu0 %v117
    %190 = vmatpush1.msra.mxu0 %v116
    %191 = vmatprep.subr.mxu0 %v120
    %192 = vmatpush1.msra.mxu0 %v119
    %193 = vmatprep.subr.mxu0 %v123
    %194 = vmatpush1.msra.mxu0 %v122
    %195 = vmatprep.subr.mxu0 %v126
    %196 = vmatpush1.msra.mxu0 %v125
    %197 = vmatprep.subr.mxu0 %v129
    %198 = vmatpush1.msra.mxu0 %v128
    %199 = vmatprep.subr.mxu0 %v132
    %200 = vmatpush1.msra.mxu0 %v131
    %201 = vmatprep.subr.mxu0 %v135
    %202 = vmatpush1.msra.mxu0 %v134
    %203 = vmatprep.subr.mxu0 0.0
    %204 = vmatpush1.msra.mxu0 0.0
    %205 = vmatprep.subr.mxu0 0.0
    %206 = vmatpush1.msra.mxu0 0.0
    %207 = vmatprep.subr.mxu0 0.0
    %208 = vmatpush1.msra.mxu0 0.0
    %209 = vmatprep.subr.mxu0 0.0
    %210 = vmatpush1.msra.mxu0 0.0
    %211 = vmatprep.subr.mxu0 0.0
    %212 = vmatpush1.msra.mxu0 0.0
    %213 = vmatprep.subr.mxu0 0.0
    %214 = vmatpush1.msra.mxu0 0.0
    %215 = vmatprep.subr.mxu0 0.0
    %216 = vmatpush1.msra.mxu0 0.0
    %217 = vmatprep.subr.mxu0 0.0
    %218 = vmatpush1.msra.mxu0 0.0
    %219 = vmatprep.subr.mxu0 0.0
    %220 = vmatpush1.msra.mxu0 0.0
    %221 = vmatprep.subr.mxu0 0.0
    %222 = vmatpush1.msra.mxu0 0.0
    %223 = vmatprep.subr.mxu0 0.0
    %224 = vmatpush1.msra.mxu0 0.0
    %225 = vmatprep.subr.mxu0 0.0
    %226 = vmatpush1.msra.mxu0 0.0
    %227 = vmatprep.subr.mxu0 0.0
    %228 = vmatpush1.msra.mxu0 0.0
    %229 = vmatprep.subr.mxu0 0.0
    %230 = vmatpush1.msra.mxu0 0.0
    %231 = vmatprep.subr.mxu0 0.0
    %232 = vmatpush1.msra.mxu0 0.0
    %233 = vmatprep.subr.mxu0 0.0
    %234 = vmatpush1.msra.mxu0 0.0
    %235 = vmatprep.subr.mxu0 0.0
    %236 = vmatpush1.msra.mxu0 0.0
    %237 = vmatprep.subr.mxu0 0.0
    %238 = vmatpush1.msra.mxu0 0.0
    %239 = vmatprep.subr.mxu0 0.0
    %240 = vmatpush1.msra.mxu0 0.0
    %241 = vmatprep.subr.mxu0 0.0
    %242 = vmatpush1.msra.mxu0 0.0
    %243 = vmatprep.mubr.f32.mxu0 0.0
    %244 = vmatmul.mubr.f32.gmra.mrb[0].mxu0 %v156
    %v245 = vpop.f32.mrb[0].mxu0
    %v246 = vadd.f32 %v142, %v245
    %v247 = vpop.f32.mrb[0].mxu0
    %v248 = vadd.f32 %v146, %v247
    %249 = vmatprep.mubr.f32.mxu0 0.0
    %250 = vmatmul.mubr.f32.gmra.mrb[0].mxu0 %v159
    %v251 = vpop.f32.mrb[0].mxu0
    %v252 = vadd.f32 %v142, %v251
    %v253 = vpop.f32.mrb[0].mxu0
    %v254 = vadd.f32 %v146, %v253
    %255 = vmatprep.mubr.f32.mxu0 0.0
    %256 = vmatmul.mubr.f32.gmra.mrb[0].mxu0 %v162
    %v257 = vpop.f32.mrb[0].mxu0
    %v258 = vadd.f32 %v142, %v257
    %v259 = vpop.f32.mrb[0].mxu0
    %v260 = vadd.f32 %v146, %v259
    %261 = vmatprep.mubr.f32.mxu0 0.0
    %262 = vmatmul.mubr.f32.gmra.mrb[0].mxu0 %v165
    %v263 = vpop.f32.mrb[0].mxu0
    %v264 = vadd.f32 %v142, %v263
    %v265 = vpop.f32.mrb[0].mxu0
    %v266 = vadd.f32 %v146, %v265
    %267 = vmatprep.mubr.f32.mxu0 0.0
    %268 = vmatmul.mubr.f32.gmra.mrb[0].mxu0 %v168
    %v269 = vpop.f32.mrb[0].mxu0
    %v270 = vadd.f32 %v142, %v269
    %v271 = vpop.f32.mrb[0].mxu0
    %v272 = vadd.f32 %v146, %v271
    %273 = vmatprep.mubr.f32.mxu0 0.0
    %274 = vmatmul.mubr.f32.gmra.mrb[0].mxu0 %v171
    %v275 = vpop.f32.mrb[0].mxu0
    %v276 = vadd.f32 %v142, %v275
    %v277 = vpop.f32.mrb[0].mxu0
    %v278 = vadd.f32 %v146, %v277
    %279 = vmatprep.mubr.f32.mxu0 0.0
    %280 = vmatmul.mubr.f32.gmra.mrb[0].mxu0 %v174
    %v281 = vpop.f32.mrb[0].mxu0
    %v282 = vadd.f32 %v142, %v281
    %v283 = vpop.f32.mrb[0].mxu0
    %v284 = vadd.f32 %v146, %v283
    %285 = vmatprep.mubr.f32.mxu0 0.0
    %286 = vmatmul.mubr.f32.gmra.mrb[0].mxu0 %v177
    %v287 = vpop.f32.mrb[0].mxu0
    %v288 = vadd.f32 %v142, %v287
    %v289 = vpop.f32.mrb[0].mxu0
    %v290 = vadd.f32 %v146, %v289
    %291 = vdwg.mxu0
    %292 = vmatprep.subr.mxu0 0.0
    %293 = vmatpush1.msra.mxu0 %v103
    %294 = vmatprep.subr.mxu0 0.0
    %295 = vmatpush1.msra.mxu0 %v106
    %296 = vmatprep.subr.mxu0 0.0
    %297 = vmatpush1.msra.mxu0 %v109
    %298 = vmatprep.subr.mxu0 0.0
    %299 = vmatpush1.msra.mxu0 %v112
    %300 = vmatprep.subr.mxu0 0.0
    %301 = vmatpush1.msra.mxu0 %v115
    %302 = vmatprep.subr.mxu0 0.0
    %303 = vmatpush1.msra.mxu0 %v118
    %304 = vmatprep.subr.mxu0 0.0
    %305 = vmatpush1.msra.mxu0 %v121
    %306 = vmatprep.subr.mxu0 0.0
    %307 = vmatpush1.msra.mxu0 %v124
    %308 = vmatprep.subr.mxu0 0.0
    %309 = vmatpush1.msra.mxu0 %v127
    %310 = vmatprep.subr.mxu0 0.0
    %311 = vmatpush1.msra.mxu0 %v130
    %312 = vmatprep.subr.mxu0 0.0
    %313 = vmatpush1.msra.mxu0 %v133
    %314 = vmatprep.subr.mxu0 0.0
    %315 = vmatpush1.msra.mxu0 %v136
    %316 = vmatprep.subr.mxu0 0.0
    %317 = vmatpush1.msra.mxu0 0.0
    %318 = vmatprep.subr.mxu0 0.0
    %319 = vmatpush1.msra.mxu0 0.0
    %320 = vmatprep.subr.mxu0 0.0
    %321 = vmatpush1.msra.mxu0 0.0
    %322 = vmatprep.subr.mxu0 0.0
    %323 = vmatpush1.msra.mxu0 0.0
    %324 = vmatprep.subr.mxu0 0.0
    %325 = vmatpush1.msra.mxu0 0.0
    %326 = vmatprep.subr.mxu0 0.0
    %327 = vmatpush1.msra.mxu0 0.0
    %328 = vmatprep.subr.mxu0 0.0
    %329 = vmatpush1.msra.mxu0 0.0
    %330 = vmatprep.subr.mxu0 0.0
    %331 = vmatpush1.msra.mxu0 0.0
    %332 = vmatprep.subr.mxu0 0.0
    %333 = vmatpush1.msra.mxu0 0.0
    %334 = vmatprep.subr.mxu0 0.0
    %335 = vmatpush1.msra.mxu0 0.0
    %336 = vmatprep.subr.mxu0 0.0
    %337 = vmatpush1.msra.mxu0 0.0
    %338 = vmatprep.subr.mxu0 0.0
    %339 = vmatpush1.msra.mxu0 0.0
    %340 = vmatprep.subr.mxu0 0.0
    %341 = vmatpush1.msra.mxu0 0.0
    %342 = vmatprep.subr.mxu0 0.0
    %343 = vmatpush1.msra.mxu0 0.0
    %344 = vmatprep.subr.mxu0 0.0
    %345 = vmatpush1.msra.mxu0 0.0
    %346 = vmatprep.subr.mxu0 0.0
    %347 = vmatpush1.msra.mxu0 0.0
    %348 = vmatprep.subr.mxu0 0.0
    %349 = vmatpush1.msra.mxu0 0.0
    %350 = vmatprep.subr.mxu0 0.0
    %351 = vmatpush1.msra.mxu0 0.0
    %352 = vmatprep.subr.mxu0 0.0
    %353 = vmatpush1.msra.mxu0 0.0
    %354 = vmatprep.subr.mxu0 0.0
    %355 = vmatpush1.msra.mxu0 0.0
    %356 = vmatprep.mubr.f32.mxu0 0.0
    %357 = vmatmul.mubr.f32.gmra.mrb[0].mxu0 %v156
    %v358 = vpop.f32.mrb[0].mxu0
    %v359 = vadd.f32 %v150, %v358
    %v360 = vpop.f32.mrb[0].mxu0
    %361 = vmatprep.mubr.f32.mxu0 0.0
    %362 = vmatmul.mubr.f32.gmra.mrb[0].mxu0 %v159
    %v363 = vpop.f32.mrb[0].mxu0
    %v364 = vadd.f32 %v150, %v363
    %v365 = vpop.f32.mrb[0].mxu0
    %366 = vmatprep.mubr.f32.mxu0 0.0
    %367 = vmatmul.mubr.f32.gmra.mrb[0].mxu0 %v162
    %v368 = vpop.f32.mrb[0].mxu0
    %v369 = vadd.f32 %v150, %v368
    %v370 = vpop.f32.mrb[0].mxu0
    %371 = vmatprep.mubr.f32.mxu0 0.0
    %372 = vmatmul.mubr.f32.gmra.mrb[0].mxu0 %v165
    %v373 = vpop.f32.mrb[0].mxu0
    %v374 = vadd.f32 %v150, %v373
    %v375 = vpop.f32.mrb[0].mxu0
    %376 = vmatprep.mubr.f32.mxu0 0.0
    %377 = vmatmul.mubr.f32.gmra.mrb[0].mxu0 %v168
    %v378 = vpop.f32.mrb[0].mxu0
    %v379 = vadd.f32 %v150, %v378
    %v380 = vpop.f32.mrb[0].mxu0
    %381 = vmatprep.mubr.f32.mxu0 0.0
    %382 = vmatmul.mubr.f32.gmra.mrb[0].mxu0 %v171
    %v383 = vpop.f32.mrb[0].mxu0
    %v384 = vadd.f32 %v150, %v383
    %v385 = vpop.f32.mrb[0].mxu0
    %386 = vmatprep.mubr.f32.mxu0 0.0
    %387 = vmatmul.mubr.f32.gmra.mrb[0].mxu0 %v174
    %v388 = vpop.f32.mrb[0].mxu0
    %v389 = vadd.f32 %v150, %v388
    %v390 = vpop.f32.mrb[0].mxu0
    %391 = vmatprep.mubr.f32.mxu0 0.0
    %392 = vmatmul.mubr.f32.gmra.mrb[0].mxu0 %v177
    %v393 = vpop.f32.mrb[0].mxu0
    %v394 = vadd.f32 %v150, %v393
    %v395 = vpop.f32.mrb[0].mxu0
    %396 = vdwg.mxu0
    %v397 = vld [vmem:[#allocation8] sm:$0xff]
    %v398 = vld [vmem:[#allocation8 + $0x8] sm:$0xff]
    %v399 = vld [vmem:[#allocation8 + $0x10] sm:$0xff]
    %v400 = vld [vmem:[#allocation8 + $0x18] sm:$0xff]
    %v401 = vld [vmem:[#allocation8 + $0x20] sm:$0xff]
    %v402 = vld [vmem:[#allocation8 + $0x28] sm:$0xff]
    %v403 = vld [vmem:[#allocation8 + $0x30] sm:$0xff]
    %v404 = vld [vmem:[#allocation8 + $0x38] sm:$0xff]
    %v405 = vld [vmem:[#allocation8 + $0x40] sm:$0xff]
    %v406 = vld [vmem:[#allocation8 + $0x48] sm:$0xff]
    %v407 = vld [vmem:[#allocation8 + $0x50] sm:$0xff]
    %v408 = vld [vmem:[#allocation8 + $0x58] sm:$0xff]
    %v409 = vld [vmem:[#allocation8 + $0x60] sm:$0xff]
    %v410 = vld [vmem:[#allocation8 + $0x68] sm:$0xff]
    %v411 = vld [vmem:[#allocation8 + $0x70] sm:$0xff]
    %v412 = vld [vmem:[#allocation8 + $0x78] sm:$0xff]
    %v413 = vld [vmem:[#allocation8 + $0x80] sm:$0xff]
    %v414 = vld [vmem:[#allocation8 + $0x88] sm:$0xff]
    %v415 = vld [vmem:[#allocation8 + $0x90] sm:$0xff]
    %v416 = vld [vmem:[#allocation8 + $0x98] sm:$0xff]
    %v417 = vld [vmem:[#allocation8 + $0xa0] sm:$0xff]
    %v418 = vld [vmem:[#allocation8 + $0xa8] sm:$0xff]
    %v419 = vld [vmem:[#allocation8 + $0xb0] sm:$0xff]
    %v420 = vld [vmem:[#allocation8 + $0xb8] sm:$0xff]
    %v421 = vld [vmem:[#allocation8 + $0xc0] sm:$0xff]
    %v422 = vld [vmem:[#allocation8 + $0xc8] sm:$0xff]
    %v423 = vld [vmem:[#allocation8 + $0xd0] sm:$0xff]
    %v424 = vld [vmem:[#allocation8 + $0xd8] sm:$0xff]
    %v425 = vld [vmem:[#allocation8 + $0xe0] sm:$0xff]
    %v426 = vld [vmem:[#allocation8 + $0xe8] sm:$0xff]
    %v427 = vld [vmem:[#allocation8 + $0xf0] sm:$0xff]
    %v428 = vld [vmem:[#allocation8 + $0xf8] sm:$0xff]
    %v429 = vld [vmem:[#allocation8 + $0x100] sm:$0xff]
    %v430 = vld [vmem:[#allocation8 + $0x108] sm:$0xff]
    %v431 = vld [vmem:[#allocation8 + $0x110] sm:$0xff]
    %v432 = vld [vmem:[#allocation8 + $0x118] sm:$0xff]
    %v433 = vld [vmem:[#allocation8 + $0x120] sm:$0xff]
    %v434 = vld [vmem:[#allocation8 + $0x128] sm:$0xff]
    %v435 = vld [vmem:[#allocation8 + $0x130] sm:$0xff]
    %v436 = vld [vmem:[#allocation8 + $0x138] sm:$0xff]
    %v437 = vld [vmem:[#allocation8 + $0x140] sm:$0xff]
    %v438 = vld [vmem:[#allocation8 + $0x148] sm:$0xff]
    %v439 = vld [vmem:[#allocation8 + $0x150] sm:$0xff]
    %v440 = vld [vmem:[#allocation8 + $0x158] sm:$0xff]
    %v441 = vld [vmem:[#allocation8 + $0x160] sm:$0xff]
    %v442 = vld [vmem:[#allocation8 + $0x168] sm:$0xff]
    %v443 = vld [vmem:[#allocation8 + $0x170] sm:$0xff]
    %v444 = vld [vmem:[#allocation8 + $0x178] sm:$0xff]
    %v445 = vld [vmem:[%s5] sm:$0x7]
    %v446 = vld [vmem:[#allocation5] sm:$0xff]
    %v448 = vlaneseq
    %v449 = vshrl.u32 %v448, 7
    %v450 = vsub.s32 0, %v449
    %v451 = vrot.slane %v445, %v450
    %v452 = vlaneseq
    %v453 = vshrl.u32 %v452, 7
    %v454 = vsub.s32 1, %v453
    %v455 = vrot.slane %v445, %v454
    %v456 = vlaneseq
    %v457 = vshrl.u32 %v456, 7
    %v458 = vsub.s32 2, %v457
    %v459 = vrot.slane %v445, %v458
    %463 = vmatprep.subr.mxu0 %v398
    %464 = vmatpush1.msra.mxu0 %v397
    %465 = vmatprep.subr.mxu0 %v401
    %466 = vmatpush1.msra.mxu0 %v400
    %467 = vmatprep.subr.mxu0 %v404
    %468 = vmatpush1.msra.mxu0 %v403
    %469 = vmatprep.subr.mxu0 %v407
    %470 = vmatpush1.msra.mxu0 %v406
    %471 = vmatprep.subr.mxu0 %v410
    %472 = vmatpush1.msra.mxu0 %v409
    %473 = vmatprep.subr.mxu0 %v413
    %474 = vmatpush1.msra.mxu0 %v412
    %475 = vmatprep.subr.mxu0 %v416
    %476 = vmatpush1.msra.mxu0 %v415
    %477 = vmatprep.subr.mxu0 %v419
    %478 = vmatpush1.msra.mxu0 %v418
    %479 = vmatprep.subr.mxu0 %v422
    %480 = vmatpush1.msra.mxu0 %v421
    %481 = vmatprep.subr.mxu0 %v425
    %482 = vmatpush1.msra.mxu0 %v424
    %483 = vmatprep.subr.mxu0 %v428
    %484 = vmatpush1.msra.mxu0 %v427
    %485 = vmatprep.subr.mxu0 %v431
    %486 = vmatpush1.msra.mxu0 %v430
    %487 = vmatprep.subr.mxu0 %v434
    %488 = vmatpush1.msra.mxu0 %v433
    %489 = vmatprep.subr.mxu0 %v437
    %490 = vmatpush1.msra.mxu0 %v436
    %491 = vmatprep.subr.mxu0 %v440
    %492 = vmatpush1.msra.mxu0 %v439
    %493 = vmatprep.subr.mxu0 %v443
    %494 = vmatpush1.msra.mxu0 %v442
    %495 = vmatprep.subr.mxu0 0.0
    %496 = vmatpush1.msra.mxu0 0.0
    %497 = vmatprep.subr.mxu0 0.0
    %498 = vmatpush1.msra.mxu0 0.0
    %499 = vmatprep.subr.mxu0 0.0
    %500 = vmatpush1.msra.mxu0 0.0
    %501 = vmatprep.subr.mxu0 0.0
    %502 = vmatpush1.msra.mxu0 0.0
    %503 = vmatprep.subr.mxu0 0.0
    %504 = vmatpush1.msra.mxu0 0.0
    %505 = vmatprep.subr.mxu0 0.0
    %506 = vmatpush1.msra.mxu0 0.0
    %507 = vmatprep.subr.mxu0 0.0
    %508 = vmatpush1.msra.mxu0 0.0
    %509 = vmatprep.subr.mxu0 0.0
    %510 = vmatpush1.msra.mxu0 0.0
    %511 = vmatprep.subr.mxu0 0.0
    %512 = vmatpush1.msra.mxu0 0.0
    %513 = vmatprep.subr.mxu0 0.0
    %514 = vmatpush1.msra.mxu0 0.0
    %515 = vmatprep.subr.mxu0 0.0
    %516 = vmatpush1.msra.mxu0 0.0
    %517 = vmatprep.subr.mxu0 0.0
    %518 = vmatpush1.msra.mxu0 0.0
    %519 = vmatprep.subr.mxu0 0.0
    %520 = vmatpush1.msra.mxu0 0.0
    %521 = vmatprep.subr.mxu0 0.0
    %522 = vmatpush1.msra.mxu0 0.0
    %523 = vmatprep.subr.mxu0 0.0
    %524 = vmatpush1.msra.mxu0 0.0
    %525 = vmatprep.subr.mxu0 0.0
    %526 = vmatpush1.msra.mxu0 0.0
    %527 = vmatprep.mubr.f32.mxu0 0.0
    %528 = vmatmul.mubr.f32.gmra.mrb[0].mxu0 0.0
    %v529 = vpop.f32.mrb[0].mxu0
    %v530 = vadd.f32 %v451, %v529
    %v531 = vpop.f32.mrb[0].mxu0
    %v532 = vadd.f32 %v455, %v531
    %533 = vdwg.mxu0
    %534 = vmatprep.subr.mxu0 0.0
    %535 = vmatpush1.msra.mxu0 %v399
    %536 = vmatprep.subr.mxu0 0.0
    %537 = vmatpush1.msra.mxu0 %v402
    %538 = vmatprep.subr.mxu0 0.0
    %539 = vmatpush1.msra.mxu0 %v405
    %540 = vmatprep.subr.mxu0 0.0
    %541 = vmatpush1.msra.mxu0 %v408
    %542 = vmatprep.subr.mxu0 0.0
    %543 = vmatpush1.msra.mxu0 %v411
    %544 = vmatprep.subr.mxu0 0.0
    %545 = vmatpush1.msra.mxu0 %v414
    %546 = vmatprep.subr.mxu0 0.0
    %547 = vmatpush1.msra.mxu0 %v417
    %548 = vmatprep.subr.mxu0 0.0
    %549 = vmatpush1.msra.mxu0 %v420
    %550 = vmatprep.subr.mxu0 0.0
    %551 = vmatpush1.msra.mxu0 %v423
    %552 = vmatprep.subr.mxu0 0.0
    %553 = vmatpush1.msra.mxu0 %v426
    %554 = vmatprep.subr.mxu0 0.0
    %555 = vmatpush1.msra.mxu0 %v429
    %556 = vmatprep.subr.mxu0 0.0
    %557 = vmatpush1.msra.mxu0 %v432
    %558 = vmatprep.subr.mxu0 0.0
    %559 = vmatpush1.msra.mxu0 %v435
    %560 = vmatprep.subr.mxu0 0.0
    %561 = vmatpush1.msra.mxu0 %v438
    %562 = vmatprep.subr.mxu0 0.0
    %563 = vmatpush1.msra.mxu0 %v441
    %564 = vmatprep.subr.mxu0 0.0
    %565 = vmatpush1.msra.mxu0 %v444
    %566 = vmatprep.subr.mxu0 0.0
    %567 = vmatpush1.msra.mxu0 0.0
    %568 = vmatprep.subr.mxu0 0.0
    %569 = vmatpush1.msra.mxu0 0.0
    %570 = vmatprep.subr.mxu0 0.0
    %571 = vmatpush1.msra.mxu0 0.0
    %572 = vmatprep.subr.mxu0 0.0
    %573 = vmatpush1.msra.mxu0 0.0
    %574 = vmatprep.subr.mxu0 0.0
    %575 = vmatpush1.msra.mxu0 0.0
    %576 = vmatprep.subr.mxu0 0.0
    %577 = vmatpush1.msra.mxu0 0.0
    %578 = vmatprep.subr.mxu0 0.0
    %579 = vmatpush1.msra.mxu0 0.0
    %580 = vmatprep.subr.mxu0 0.0
    %581 = vmatpush1.msra.mxu0 0.0
    %582 = vmatprep.subr.mxu0 0.0
    %583 = vmatpush1.msra.mxu0 0.0
    %584 = vmatprep.subr.mxu0 0.0
    %585 = vmatpush1.msra.mxu0 0.0
    %586 = vmatprep.subr.mxu0 0.0
    %587 = vmatpush1.msra.mxu0 0.0
    %588 = vmatprep.subr.mxu0 0.0
    %589 = vmatpush1.msra.mxu0 0.0
    %590 = vmatprep.subr.mxu0 0.0
    %591 = vmatpush1.msra.mxu0 0.0
    %592 = vmatprep.subr.mxu0 0.0
    %593 = vmatpush1.msra.mxu0 0.0
    %594 = vmatprep.subr.mxu0 0.0
    %595 = vmatpush1.msra.mxu0 0.0
    %596 = vmatprep.subr.mxu0 0.0
    %597 = vmatpush1.msra.mxu0 0.0
    %598 = vmatprep.mubr.f32.mxu0 0.0
    %599 = vmatmul.mubr.f32.gmra.mrb[0].mxu0 0.0
    %v600 = vpop.f32.mrb[0].mxu0
    %v601 = vadd.f32 %v459, %v600
    %v602 = vpop.f32.mrb[0].mxu0
    %603 = vdwg.mxu0
    %v604 = vadd.f32 %v246, %v530
    %v605 = vxor.u32 %v604, 2147483648
    %v606 = vmul.f32 %v605, 1.442695
    %v607 = vpow.pop %v606
    %v608 = vadd.f32 %v607, 1.0
    %v609 = vrcp.pop %v608
    %v610 = vmul.f32 1.0, %v609
    %v611 = vadd.f32 %v248, %v532
    %v612 = vxor.u32 %v611, 2147483648
    %v613 = vmul.f32 %v612, 1.442695
    %v614 = vpow.pop %v613
    %v615 = vadd.f32 %v614, 1.0
    %v616 = vrcp.pop %v615
    %v617 = vmul.f32 1.0, %v616
    %v618 = vmul.f32 %v610, %v601
    %v619 = vadd.f32 %v359, %v618
    %v620 = vtanh.pop %v619
    %v621 = vsub.f32 1.0, %v617
    %v622 = vmul.f32 %v621, %v620
    %v623 = vmul.f32 %v617, 0.0
    %v624 = vadd.f32 %v622, %v623
    %vm625 = vcmp.gt.f32.partialorder %v446, 0.0
    %v626 = vsel %vm625, %v624, 0.0
    %627 = vmatprep.subr.mxu0 %v398
    %628 = vmatpush1.msra.mxu0 %v397
    %629 = vmatprep.subr.mxu0 %v401
    %630 = vmatpush1.msra.mxu0 %v400
    %631 = vmatprep.subr.mxu0 %v404
    %632 = vmatpush1.msra.mxu0 %v403
    %633 = vmatprep.subr.mxu0 %v407
    %634 = vmatpush1.msra.mxu0 %v406
    %635 = vmatprep.subr.mxu0 %v410
    %636 = vmatpush1.msra.mxu0 %v409
    %637 = vmatprep.subr.mxu0 %v413
    %638 = vmatpush1.msra.mxu0 %v412
    %639 = vmatprep.subr.mxu0 %v416
    %640 = vmatpush1.msra.mxu0 %v415
    %641 = vmatprep.subr.mxu0 %v419
    %642 = vmatpush1.msra.mxu0 %v418
    %643 = vmatprep.subr.mxu0 %v422
    %644 = vmatpush1.msra.mxu0 %v421
    %645 = vmatprep.subr.mxu0 %v425
    %646 = vmatpush1.msra.mxu0 %v424
    %647 = vmatprep.subr.mxu0 %v428
    %648 = vmatpush1.msra.mxu0 %v427
    %649 = vmatprep.subr.mxu0 %v431
    %650 = vmatpush1.msra.mxu0 %v430
    %651 = vmatprep.subr.mxu0 %v434
    %652 = vmatpush1.msra.mxu0 %v433
    %653 = vmatprep.subr.mxu0 %v437
    %654 = vmatpush1.msra.mxu0 %v436
    %655 = vmatprep.subr.mxu0 %v440
    %656 = vmatpush1.msra.mxu0 %v439
    %657 = vmatprep.subr.mxu0 %v443
    %658 = vmatpush1.msra.mxu0 %v442
    %659 = vmatprep.subr.mxu0 0.0
    %660 = vmatpush1.msra.mxu0 0.0
    %661 = vmatprep.subr.mxu0 0.0
    %662 = vmatpush1.msra.mxu0 0.0
    %663 = vmatprep.subr.mxu0 0.0
    %664 = vmatpush1.msra.mxu0 0.0
    %665 = vmatprep.subr.mxu0 0.0
    %666 = vmatpush1.msra.mxu0 0.0
    %667 = vmatprep.subr.mxu0 0.0
    %668 = vmatpush1.msra.mxu0 0.0
    %669 = vmatprep.subr.mxu0 0.0
    %670 = vmatpush1.msra.mxu0 0.0
    %671 = vmatprep.subr.mxu0 0.0
    %672 = vmatpush1.msra.mxu0 0.0
    %673 = vmatprep.subr.mxu0 0.0
    %674 = vmatpush1.msra.mxu0 0.0
    %675 = vmatprep.subr.mxu0 0.0
    %676 = vmatpush1.msra.mxu0 0.0
    %677 = vmatprep.subr.mxu0 0.0
    %678 = vmatpush1.msra.mxu0 0.0
    %679 = vmatprep.subr.mxu0 0.0
    %680 = vmatpush1.msra.mxu0 0.0
    %681 = vmatprep.subr.mxu0 0.0
    %682 = vmatpush1.msra.mxu0 0.0
    %683 = vmatprep.subr.mxu0 0.0
    %684 = vmatpush1.msra.mxu0 0.0
    %685 = vmatprep.subr.mxu0 0.0
    %686 = vmatpush1.msra.mxu0 0.0
    %687 = vmatprep.subr.mxu0 0.0
    %688 = vmatpush1.msra.mxu0 0.0
    %689 = vmatprep.subr.mxu0 0.0
    %690 = vmatpush1.msra.mxu0 0.0
    %691 = vmatprep.mubr.f32.mxu0 0.0
    %692 = vmatmul.mubr.f32.gmra.mrb[0].mxu0 %v626
    %v693 = vpop.f32.mrb[0].mxu0
    %v694 = vadd.f32 %v451, %v693
    %v695 = vpop.f32.mrb[0].mxu0
    %v696 = vadd.f32 %v455, %v695
    %697 = vdwg.mxu0
    %698 = vmatprep.subr.mxu0 0.0
    %699 = vmatpush1.msra.mxu0 %v399
    %700 = vmatprep.subr.mxu0 0.0
    %701 = vmatpush1.msra.mxu0 %v402
    %702 = vmatprep.subr.mxu0 0.0
    %703 = vmatpush1.msra.mxu0 %v405
    %704 = vmatprep.subr.mxu0 0.0
    %705 = vmatpush1.msra.mxu0 %v408
    %706 = vmatprep.subr.mxu0 0.0
    %707 = vmatpush1.msra.mxu0 %v411
    %708 = vmatprep.subr.mxu0 0.0
    %709 = vmatpush1.msra.mxu0 %v414
    %710 = vmatprep.subr.mxu0 0.0
    %711 = vmatpush1.msra.mxu0 %v417
    %712 = vmatprep.subr.mxu0 0.0
    %713 = vmatpush1.msra.mxu0 %v420
    %714 = vmatprep.subr.mxu0 0.0
    %715 = vmatpush1.msra.mxu0 %v423
    %716 = vmatprep.subr.mxu0 0.0
    %717 = vmatpush1.msra.mxu0 %v426
    %718 = vmatprep.subr.mxu0 0.0
    %719 = vmatpush1.msra.mxu0 %v429
    %720 = vmatprep.subr.mxu0 0.0
    %721 = vmatpush1.msra.mxu0 %v432
    %722 = vmatprep.subr.mxu0 0.0
    %723 = vmatpush1.msra.mxu0 %v435
    %724 = vmatprep.subr.mxu0 0.0
    %725 = vmatpush1.msra.mxu0 %v438
    %726 = vmatprep.subr.mxu0 0.0
    %727 = vmatpush1.msra.mxu0 %v441
    %728 = vmatprep.subr.mxu0 0.0
    %729 = vmatpush1.msra.mxu0 %v444
    %730 = vmatprep.subr.mxu0 0.0
    %731 = vmatpush1.msra.mxu0 0.0
    %732 = vmatprep.subr.mxu0 0.0
    %733 = vmatpush1.msra.mxu0 0.0
    %734 = vmatprep.subr.mxu0 0.0
    %735 = vmatpush1.msra.mxu0 0.0
    %736 = vmatprep.subr.mxu0 0.0
    %737 = vmatpush1.msra.mxu0 0.0
    %738 = vmatprep.subr.mxu0 0.0
    %739 = vmatpush1.msra.mxu0 0.0
    %740 = vmatprep.subr.mxu0 0.0
    %741 = vmatpush1.msra.mxu0 0.0
    %742 = vmatprep.subr.mxu0 0.0
    %743 = vmatpush1.msra.mxu0 0.0
    %744 = vmatprep.subr.mxu0 0.0
    %745 = vmatpush1.msra.mxu0 0.0
    %746 = vmatprep.subr.mxu0 0.0
    %747 = vmatpush1.msra.mxu0 0.0
    %748 = vmatprep.subr.mxu0 0.0
    %749 = vmatpush1.msra.mxu0 0.0
    %750 = vmatprep.subr.mxu0 0.0
    %751 = vmatpush1.msra.mxu0 0.0
    %752 = vmatprep.subr.mxu0 0.0
    %753 = vmatpush1.msra.mxu0 0.0
    %754 = vmatprep.subr.mxu0 0.0
    %755 = vmatpush1.msra.mxu0 0.0
    %756 = vmatprep.subr.mxu0 0.0
    %757 = vmatpush1.msra.mxu0 0.0
    %758 = vmatprep.subr.mxu0 0.0
    %759 = vmatpush1.msra.mxu0 0.0
    %760 = vmatprep.subr.mxu0 0.0
    %761 = vmatpush1.msra.mxu0 0.0
    %762 = vmatprep.mubr.f32.mxu0 0.0
    %763 = vmatmul.mubr.f32.gmra.mrb[0].mxu0 %v626
    %v764 = vpop.f32.mrb[0].mxu0
    %v765 = vadd.f32 %v459, %v764
    %v766 = vpop.f32.mrb[0].mxu0
    %767 = vdwg.mxu0
    %v768 = vadd.f32 %v252, %v694
    %v769 = vxor.u32 %v768, 2147483648
    %v770 = vmul.f32 %v769, 1.442695
    %v771 = vpow.pop %v770
    %v772 = vadd.f32 %v771, 1.0
    %v773 = vrcp.pop %v772
    %v774 = vmul.f32 1.0, %v773
    %v775 = vadd.f32 %v254, %v696
    %v776 = vxor.u32 %v775, 2147483648
    %v777 = vmul.f32 %v776, 1.442695
    %v778 = vpow.pop %v777
    %v779 = vadd.f32 %v778, 1.0
    %v780 = vrcp.pop %v779
    %v781 = vmul.f32 1.0, %v780
    %v782 = vmul.f32 %v774, %v765
    %v783 = vadd.f32 %v364, %v782
    %v784 = vtanh.pop %v783
    %v785 = vsub.f32 1.0, %v781
    %v786 = vmul.f32 %v785, %v784
    %v787 = vmul.f32 %v781, %v626
    %v788 = vadd.f32 %v786, %v787
    %vm789 = vcmp.gt.f32.partialorder %v446, 1.0
    %v790 = vsel %vm789, %v788, %v626
    %791 = vmatprep.subr.mxu0 %v398
    %792 = vmatpush1.msra.mxu0 %v397
    %793 = vmatprep.subr.mxu0 %v401
    %794 = vmatpush1.msra.mxu0 %v400
    %795 = vmatprep.subr.mxu0 %v404
    %796 = vmatpush1.msra.mxu0 %v403
    %797 = vmatprep.subr.mxu0 %v407
    %798 = vmatpush1.msra.mxu0 %v406
    %799 = vmatprep.subr.mxu0 %v410
    %800 = vmatpush1.msra.mxu0 %v409
    %801 = vmatprep.subr.mxu0 %v413
    %802 = vmatpush1.msra.mxu0 %v412
    %803 = vmatprep.subr.mxu0 %v416
    %804 = vmatpush1.msra.mxu0 %v415
    %805 = vmatprep.subr.mxu0 %v419
    %806 = vmatpush1.msra.mxu0 %v418
    %807 = vmatprep.subr.mxu0 %v422
    %808 = vmatpush1.msra.mxu0 %v421
    %809 = vmatprep.subr.mxu0 %v425
    %810 = vmatpush1.msra.mxu0 %v424
    %811 = vmatprep.subr.mxu0 %v428
    %812 = vmatpush1.msra.mxu0 %v427
    %813 = vmatprep.subr.mxu0 %v431
    %814 = vmatpush1.msra.mxu0 %v430
    %815 = vmatprep.subr.mxu0 %v434
    %816 = vmatpush1.msra.mxu0 %v433
    %817 = vmatprep.subr.mxu0 %v437
    %818 = vmatpush1.msra.mxu0 %v436
    %819 = vmatprep.subr.mxu0 %v440
    %820 = vmatpush1.msra.mxu0 %v439
    %821 = vmatprep.subr.mxu0 %v443
    %822 = vmatpush1.msra.mxu0 %v442
    %823 = vmatprep.subr.mxu0 0.0
    %824 = vmatpush1.msra.mxu0 0.0
    %825 = vmatprep.subr.mxu0 0.0
    %826 = vmatpush1.msra.mxu0 0.0
    %827 = vmatprep.subr.mxu0 0.0
    %828 = vmatpush1.msra.mxu0 0.0
    %829 = vmatprep.subr.mxu0 0.0
    %830 = vmatpush1.msra.mxu0 0.0
    %831 = vmatprep.subr.mxu0 0.0
    %832 = vmatpush1.msra.mxu0 0.0
    %833 = vmatprep.subr.mxu0 0.0
    %834 = vmatpush1.msra.mxu0 0.0
    %835 = vmatprep.subr.mxu0 0.0
    %836 = vmatpush1.msra.mxu0 0.0
    %837 = vmatprep.subr.mxu0 0.0
    %838 = vmatpush1.msra.mxu0 0.0
    %839 = vmatprep.subr.mxu0 0.0
    %840 = vmatpush1.msra.mxu0 0.0
    %841 = vmatprep.subr.mxu0 0.0
    %842 = vmatpush1.msra.mxu0 0.0
    %843 = vmatprep.subr.mxu0 0.0
    %844 = vmatpush1.msra.mxu0 0.0
    %845 = vmatprep.subr.mxu0 0.0
    %846 = vmatpush1.msra.mxu0 0.0
    %847 = vmatprep.subr.mxu0 0.0
    %848 = vmatpush1.msra.mxu0 0.0
    %849 = vmatprep.subr.mxu0 0.0
    %850 = vmatpush1.msra.mxu0 0.0
    %851 = vmatprep.subr.mxu0 0.0
    %852 = vmatpush1.msra.mxu0 0.0
    %853 = vmatprep.subr.mxu0 0.0
    %854 = vmatpush1.msra.mxu0 0.0
    %855 = vmatprep.mubr.f32.mxu0 0.0
    %856 = vmatmul.mubr.f32.gmra.mrb[0].mxu0 %v790
    %v857 = vpop.f32.mrb[0].mxu0
    %v858 = vadd.f32 %v451, %v857
    %v859 = vpop.f32.mrb[0].mxu0
    %v860 = vadd.f32 %v455, %v859
    %861 = vdwg.mxu0
    %862 = vmatprep.subr.mxu0 0.0
    %863 = vmatpush1.msra.mxu0 %v399
    %864 = vmatprep.subr.mxu0 0.0
    %865 = vmatpush1.msra.mxu0 %v402
    %866 = vmatprep.subr.mxu0 0.0
    %867 = vmatpush1.msra.mxu0 %v405
    %868 = vmatprep.subr.mxu0 0.0
    %869 = vmatpush1.msra.mxu0 %v408
    %870 = vmatprep.subr.mxu0 0.0
    %871 = vmatpush1.msra.mxu0 %v411
    %872 = vmatprep.subr.mxu0 0.0
    %873 = vmatpush1.msra.mxu0 %v414
    %874 = vmatprep.subr.mxu0 0.0
    %875 = vmatpush1.msra.mxu0 %v417
    %876 = vmatprep.subr.mxu0 0.0
    %877 = vmatpush1.msra.mxu0 %v420
    %878 = vmatprep.subr.mxu0 0.0
    %879 = vmatpush1.msra.mxu0 %v423
    %880 = vmatprep.subr.mxu0 0.0
    %881 = vmatpush1.msra.mxu0 %v426
    %882 = vmatprep.subr.mxu0 0.0
    %883 = vmatpush1.msra.mxu0 %v429
    %884 = vmatprep.subr.mxu0 0.0
    %885 = vmatpush1.msra.mxu0 %v432
    %886 = vmatprep.subr.mxu0 0.0
    %887 = vmatpush1.msra.mxu0 %v435
    %888 = vmatprep.subr.mxu0 0.0
    %889 = vmatpush1.msra.mxu0 %v438
    %890 = vmatprep.subr.mxu0 0.0
    %891 = vmatpush1.msra.mxu0 %v441
    %892 = vmatprep.subr.mxu0 0.0
    %893 = vmatpush1.msra.mxu0 %v444
    %894 = vmatprep.subr.mxu0 0.0
    %895 = vmatpush1.msra.mxu0 0.0
    %896 = vmatprep.subr.mxu0 0.0
    %897 = vmatpush1.msra.mxu0 0.0
    %898 = vmatprep.subr.mxu0 0.0
    %899 = vmatpush1.msra.mxu0 0.0
    %900 = vmatprep.subr.mxu0 0.0
    %901 = vmatpush1.msra.mxu0 0.0
    %902 = vmatprep.subr.mxu0 0.0
    %903 = vmatpush1.msra.mxu0 0.0
    %904 = vmatprep.subr.mxu0 0.0
    %905 = vmatpush1.msra.mxu0 0.0
    %906 = vmatprep.subr.mxu0 0.0
    %907 = vmatpush1.msra.mxu0 0.0
    %908 = vmatprep.subr.mxu0 0.0
    %909 = vmatpush1.msra.mxu0 0.0
    %910 = vmatprep.subr.mxu0 0.0
    %911 = vmatpush1.msra.mxu0 0.0
    %912 = vmatprep.subr.mxu0 0.0
    %913 = vmatpush1.msra.mxu0 0.0
    %914 = vmatprep.subr.mxu0 0.0
    %915 = vmatpush1.msra.mxu0 0.0
    %916 = vmatprep.subr.mxu0 0.0
    %917 = vmatpush1.msra.mxu0 0.0
    %918 = vmatprep.subr.mxu0 0.0
    %919 = vmatpush1.msra.mxu0 0.0
    %920 = vmatprep.subr.mxu0 0.0
    %921 = vmatpush1.msra.mxu0 0.0
    %922 = vmatprep.subr.mxu0 0.0
    %923 = vmatpush1.msra.mxu0 0.0
    %924 = vmatprep.subr.mxu0 0.0
    %925 = vmatpush1.msra.mxu0 0.0
    %926 = vmatprep.mubr.f32.mxu0 0.0
    %927 = vmatmul.mubr.f32.gmra.mrb[0].mxu0 %v790
    %v928 = vpop.f32.mrb[0].mxu0
    %v929 = vadd.f32 %v459, %v928
    %v930 = vpop.f32.mrb[0].mxu0
    %931 = vdwg.mxu0
    %v932 = vadd.f32 %v258, %v858
    %v933 = vxor.u32 %v932, 2147483648
    %v934 = vmul.f32 %v933, 1.442695
    %v935 = vpow.pop %v934
    %v936 = vadd.f32 %v935, 1.0
    %v937 = vrcp.pop %v936
    %v938 = vmul.f32 1.0, %v937
    %v939 = vadd.f32 %v260, %v860
    %v940 = vxor.u32 %v939, 2147483648
    %v941 = vmul.f32 %v940, 1.442695
    %v942 = vpow.pop %v941
    %v943 = vadd.f32 %v942, 1.0
    %v944 = vrcp.pop %v943
    %v945 = vmul.f32 1.0, %v944
    %v946 = vmul.f32 %v938, %v929
    %v947 = vadd.f32 %v369, %v946
    %v948 = vtanh.pop %v947
    %v949 = vsub.f32 1.0, %v945
    %v950 = vmul.f32 %v949, %v948
    %v951 = vmul.f32 %v945, %v790
    %v952 = vadd.f32 %v950, %v951
    %vm953 = vcmp.gt.f32.partialorder %v446, 2.0
    %v954 = vsel %vm953, %v952, %v790
    %955 = vmatprep.subr.mxu0 %v398
    %956 = vmatpush1.msra.mxu0 %v397
    %957 = vmatprep.subr.mxu0 %v401
    %958 = vmatpush1.msra.mxu0 %v400
    %959 = vmatprep.subr.mxu0 %v404
    %960 = vmatpush1.msra.mxu0 %v403
    %961 = vmatprep.subr.mxu0 %v407
    %962 = vmatpush1.msra.mxu0 %v406
    %963 = vmatprep.subr.mxu0 %v410
    %964 = vmatpush1.msra.mxu0 %v409
    %965 = vmatprep.subr.mxu0 %v413
    %966 = vmatpush1.msra.mxu0 %v412
    %967 = vmatprep.subr.mxu0 %v416
    %968 = vmatpush1.msra.mxu0 %v415
    %969 = vmatprep.subr.mxu0 %v419
    %970 = vmatpush1.msra.mxu0 %v418
    %971 = vmatprep.subr.mxu0 %v422
    %972 = vmatpush1.msra.mxu0 %v421
    %973 = vmatprep.subr.mxu0 %v425
    %974 = vmatpush1.msra.mxu0 %v424
    %975 = vmatprep.subr.mxu0 %v428
    %976 = vmatpush1.msra.mxu0 %v427
    %977 = vmatprep.subr.mxu0 %v431
    %978 = vmatpush1.msra.mxu0 %v430
    %979 = vmatprep.subr.mxu0 %v434
    %980 = vmatpush1.msra.mxu0 %v433
    %981 = vmatprep.subr.mxu0 %v437
    %982 = vmatpush1.msra.mxu0 %v436
    %983 = vmatprep.subr.mxu0 %v440
    %984 = vmatpush1.msra.mxu0 %v439
    %985 = vmatprep.subr.mxu0 %v443
    %986 = vmatpush1.msra.mxu0 %v442
    %987 = vmatprep.subr.mxu0 0.0
    %988 = vmatpush1.msra.mxu0 0.0
    %989 = vmatprep.subr.mxu0 0.0
    %990 = vmatpush1.msra.mxu0 0.0
    %991 = vmatprep.subr.mxu0 0.0
    %992 = vmatpush1.msra.mxu0 0.0
    %993 = vmatprep.subr.mxu0 0.0
    %994 = vmatpush1.msra.mxu0 0.0
    %995 = vmatprep.subr.mxu0 0.0
    %996 = vmatpush1.msra.mxu0 0.0
    %997 = vmatprep.subr.mxu0 0.0
    %998 = vmatpush1.msra.mxu0 0.0
    %999 = vmatprep.subr.mxu0 0.0
    %1000 = vmatpush1.msra.mxu0 0.0
    %1001 = vmatprep.subr.mxu0 0.0
    %1002 = vmatpush1.msra.mxu0 0.0
    %1003 = vmatprep.subr.mxu0 0.0
    %1004 = vmatpush1.msra.mxu0 0.0
    %1005 = vmatprep.subr.mxu0 0.0
    %1006 = vmatpush1.msra.mxu0 0.0
    %1007 = vmatprep.subr.mxu0 0.0
    %1008 = vmatpush1.msra.mxu0 0.0
    %1009 = vmatprep.subr.mxu0 0.0
    %1010 = vmatpush1.msra.mxu0 0.0
    %1011 = vmatprep.subr.mxu0 0.0
    %1012 = vmatpush1.msra.mxu0 0.0
    %1013 = vmatprep.subr.mxu0 0.0
    %1014 = vmatpush1.msra.mxu0 0.0
    %1015 = vmatprep.subr.mxu0 0.0
    %1016 = vmatpush1.msra.mxu0 0.0
    %1017 = vmatprep.subr.mxu0 0.0
    %1018 = vmatpush1.msra.mxu0 0.0
    %1019 = vmatprep.mubr.f32.mxu0 0.0
    %1020 = vmatmul.mubr.f32.gmra.mrb[0].mxu0 %v954
    %v1021 = vpop.f32.mrb[0].mxu0
    %v1022 = vadd.f32 %v451, %v1021
    %v1023 = vpop.f32.mrb[0].mxu0
    %v1024 = vadd.f32 %v455, %v1023
    %1025 = vdwg.mxu0
    %1026 = vmatprep.subr.mxu0 0.0
    %1027 = vmatpush1.msra.mxu0 %v399
    %1028 = vmatprep.subr.mxu0 0.0
    %1029 = vmatpush1.msra.mxu0 %v402
    %1030 = vmatprep.subr.mxu0 0.0
    %1031 = vmatpush1.msra.mxu0 %v405
    %1032 = vmatprep.subr.mxu0 0.0
    %1033 = vmatpush1.msra.mxu0 %v408
    %1034 = vmatprep.subr.mxu0 0.0
    %1035 = vmatpush1.msra.mxu0 %v411
    %1036 = vmatprep.subr.mxu0 0.0
    %1037 = vmatpush1.msra.mxu0 %v414
    %1038 = vmatprep.subr.mxu0 0.0
    %1039 = vmatpush1.msra.mxu0 %v417
    %1040 = vmatprep.subr.mxu0 0.0
    %1041 = vmatpush1.msra.mxu0 %v420
    %1042 = vmatprep.subr.mxu0 0.0
    %1043 = vmatpush1.msra.mxu0 %v423
    %1044 = vmatprep.subr.mxu0 0.0
    %1045 = vmatpush1.msra.mxu0 %v426
    %1046 = vmatprep.subr.mxu0 0.0
    %1047 = vmatpush1.msra.mxu0 %v429
    %1048 = vmatprep.subr.mxu0 0.0
    %1049 = vmatpush1.msra.mxu0 %v432
    %1050 = vmatprep.subr.mxu0 0.0
    %1051 = vmatpush1.msra.mxu0 %v435
    %1052 = vmatprep.subr.mxu0 0.0
    %1053 = vmatpush1.msra.mxu0 %v438
    %1054 = vmatprep.subr.mxu0 0.0
    %1055 = vmatpush1.msra.mxu0 %v441
    %1056 = vmatprep.subr.mxu0 0.0
    %1057 = vmatpush1.msra.mxu0 %v444
    %1058 = vmatprep.subr.mxu0 0.0
    %1059 = vmatpush1.msra.mxu0 0.0
    %1060 = vmatprep.subr.mxu0 0.0
    %1061 = vmatpush1.msra.mxu0 0.0
    %1062 = vmatprep.subr.mxu0 0.0
    %1063 = vmatpush1.msra.mxu0 0.0
    %1064 = vmatprep.subr.mxu0 0.0
    %1065 = vmatpush1.msra.mxu0 0.0
    %1066 = vmatprep.subr.mxu0 0.0
    %1067 = vmatpush1.msra.mxu0 0.0
    %1068 = vmatprep.subr.mxu0 0.0
    %1069 = vmatpush1.msra.mxu0 0.0
    %1070 = vmatprep.subr.mxu0 0.0
    %1071 = vmatpush1.msra.mxu0 0.0
    %1072 = vmatprep.subr.mxu0 0.0
    %1073 = vmatpush1.msra.mxu0 0.0
    %1074 = vmatprep.subr.mxu0 0.0
    %1075 = vmatpush1.msra.mxu0 0.0
    %1076 = vmatprep.subr.mxu0 0.0
    %1077 = vmatpush1.msra.mxu0 0.0
    %1078 = vmatprep.subr.mxu0 0.0
    %1079 = vmatpush1.msra.mxu0 0.0
    %1080 = vmatprep.subr.mxu0 0.0
    %1081 = vmatpush1.msra.mxu0 0.0
    %1082 = vmatprep.subr.mxu0 0.0
    %1083 = vmatpush1.msra.mxu0 0.0
    %1084 = vmatprep.subr.mxu0 0.0
    %1085 = vmatpush1.msra.mxu0 0.0
    %1086 = vmatprep.subr.mxu0 0.0
    %1087 = vmatpush1.msra.mxu0 0.0
    %1088 = vmatprep.subr.mxu0 0.0
    %1089 = vmatpush1.msra.mxu0 0.0
    %1090 = vmatprep.mubr.f32.mxu0 0.0
    %1091 = vmatmul.mubr.f32.gmra.mrb[0].mxu0 %v954
    %v1092 = vpop.f32.mrb[0].mxu0
    %v1093 = vadd.f32 %v459, %v1092
    %v1094 = vpop.f32.mrb[0].mxu0
    %1095 = vdwg.mxu0
    %v1096 = vadd.f32 %v264, %v1022
    %v1097 = vxor.u32 %v1096, 2147483648
    %v1098 = vmul.f32 %v1097, 1.442695
    %v1099 = vpow.pop %v1098
    %v1100 = vadd.f32 %v1099, 1.0
    %v1101 = vrcp.pop %v1100
    %v1102 = vmul.f32 1.0, %v1101
    %v1103 = vadd.f32 %v266, %v1024
    %v1104 = vxor.u32 %v1103, 2147483648
    %v1105 = vmul.f32 %v1104, 1.442695
    %v1106 = vpow.pop %v1105
    %v1107 = vadd.f32 %v1106, 1.0
    %v1108 = vrcp.pop %v1107
    %v1109 = vmul.f32 1.0, %v1108
    %v1110 = vmul.f32 %v1102, %v1093
    %v1111 = vadd.f32 %v374, %v1110
    %v1112 = vtanh.pop %v1111
    %v1113 = vsub.f32 1.0, %v1109
    %v1114 = vmul.f32 %v1113, %v1112
    %v1115 = vmul.f32 %v1109, %v954
    %v1116 = vadd.f32 %v1114, %v1115
    %vm1117 = vcmp.gt.f32.partialorder %v446, 3.0
    %v1118 = vsel %vm1117, %v1116, %v954
    %1119 = vmatprep.subr.mxu0 %v398
    %1120 = vmatpush1.msra.mxu0 %v397
    %1121 = vmatprep.subr.mxu0 %v401
    %1122 = vmatpush1.msra.mxu0 %v400
    %1123 = vmatprep.subr.mxu0 %v404
    %1124 = vmatpush1.msra.mxu0 %v403
    %1125 = vmatprep.subr.mxu0 %v407
    %1126 = vmatpush1.msra.mxu0 %v406
    %1127 = vmatprep.subr.mxu0 %v410
    %1128 = vmatpush1.msra.mxu0 %v409
    %1129 = vmatprep.subr.mxu0 %v413
    %1130 = vmatpush1.msra.mxu0 %v412
    %1131 = vmatprep.subr.mxu0 %v416
    %1132 = vmatpush1.msra.mxu0 %v415
    %1133 = vmatprep.subr.mxu0 %v419
    %1134 = vmatpush1.msra.mxu0 %v418
    %1135 = vmatprep.subr.mxu0 %v422
    %1136 = vmatpush1.msra.mxu0 %v421
    %1137 = vmatprep.subr.mxu0 %v425
    %1138 = vmatpush1.msra.mxu0 %v424
    %1139 = vmatprep.subr.mxu0 %v428
    %1140 = vmatpush1.msra.mxu0 %v427
    %1141 = vmatprep.subr.mxu0 %v431
    %1142 = vmatpush1.msra.mxu0 %v430
    %1143 = vmatprep.subr.mxu0 %v434
    %1144 = vmatpush1.msra.mxu0 %v433
    %1145 = vmatprep.subr.mxu0 %v437
    %1146 = vmatpush1.msra.mxu0 %v436
    %1147 = vmatprep.subr.mxu0 %v440
    %1148 = vmatpush1.msra.mxu0 %v439
    %1149 = vmatprep.subr.mxu0 %v443
    %1150 = vmatpush1.msra.mxu0 %v442
    %1151 = vmatprep.subr.mxu0 0.0
    %1152 = vmatpush1.msra.mxu0 0.0
    %1153 = vmatprep.subr.mxu0 0.0
    %1154 = vmatpush1.msra.mxu0 0.0
    %1155 = vmatprep.subr.mxu0 0.0
    %1156 = vmatpush1.msra.mxu0 0.0
    %1157 = vmatprep.subr.mxu0 0.0
    %1158 = vmatpush1.msra.mxu0 0.0
    %1159 = vmatprep.subr.mxu0 0.0
    %1160 = vmatpush1.msra.mxu0 0.0
    %1161 = vmatprep.subr.mxu0 0.0
    %1162 = vmatpush1.msra.mxu0 0.0
    %1163 = vmatprep.subr.mxu0 0.0
    %1164 = vmatpush1.msra.mxu0 0.0
    %1165 = vmatprep.subr.mxu0 0.0
    %1166 = vmatpush1.msra.mxu0 0.0
    %1167 = vmatprep.subr.mxu0 0.0
    %1168 = vmatpush1.msra.mxu0 0.0
    %1169 = vmatprep.subr.mxu0 0.0
    %1170 = vmatpush1.msra.mxu0 0.0
    %1171 = vmatprep.subr.mxu0 0.0
    %1172 = vmatpush1.msra.mxu0 0.0
    %1173 = vmatprep.subr.mxu0 0.0
    %1174 = vmatpush1.msra.mxu0 0.0
    %1175 = vmatprep.subr.mxu0 0.0
    %1176 = vmatpush1.msra.mxu0 0.0
    %1177 = vmatprep.subr.mxu0 0.0
    %1178 = vmatpush1.msra.mxu0 0.0
    %1179 = vmatprep.subr.mxu0 0.0
    %1180 = vmatpush1.msra.mxu0 0.0
    %1181 = vmatprep.subr.mxu0 0.0
    %1182 = vmatpush1.msra.mxu0 0.0
    %1183 = vmatprep.mubr.f32.mxu0 0.0
    %1184 = vmatmul.mubr.f32.gmra.mrb[0].mxu0 %v1118
    %v1185 = vpop.f32.mrb[0].mxu0
    %v1186 = vadd.f32 %v451, %v1185
    %v1187 = vpop.f32.mrb[0].mxu0
    %v1188 = vadd.f32 %v455, %v1187
    %1189 = vdwg.mxu0
    %1190 = vmatprep.subr.mxu0 0.0
    %1191 = vmatpush1.msra.mxu0 %v399
    %1192 = vmatprep.subr.mxu0 0.0
    %1193 = vmatpush1.msra.mxu0 %v402
    %1194 = vmatprep.subr.mxu0 0.0
    %1195 = vmatpush1.msra.mxu0 %v405
    %1196 = vmatprep.subr.mxu0 0.0
    %1197 = vmatpush1.msra.mxu0 %v408
    %1198 = vmatprep.subr.mxu0 0.0
    %1199 = vmatpush1.msra.mxu0 %v411
    %1200 = vmatprep.subr.mxu0 0.0
    %1201 = vmatpush1.msra.mxu0 %v414
    %1202 = vmatprep.subr.mxu0 0.0
    %1203 = vmatpush1.msra.mxu0 %v417
    %1204 = vmatprep.subr.mxu0 0.0
    %1205 = vmatpush1.msra.mxu0 %v420
    %1206 = vmatprep.subr.mxu0 0.0
    %1207 = vmatpush1.msra.mxu0 %v423
    %1208 = vmatprep.subr.mxu0 0.0
    %1209 = vmatpush1.msra.mxu0 %v426
    %1210 = vmatprep.subr.mxu0 0.0
    %1211 = vmatpush1.msra.mxu0 %v429
    %1212 = vmatprep.subr.mxu0 0.0
    %1213 = vmatpush1.msra.mxu0 %v432
    %1214 = vmatprep.subr.mxu0 0.0
    %1215 = vmatpush1.msra.mxu0 %v435
    %1216 = vmatprep.subr.mxu0 0.0
    %1217 = vmatpush1.msra.mxu0 %v438
    %1218 = vmatprep.subr.mxu0 0.0
    %1219 = vmatpush1.msra.mxu0 %v441
    %1220 = vmatprep.subr.mxu0 0.0
    %1221 = vmatpush1.msra.mxu0 %v444
    %1222 = vmatprep.subr.mxu0 0.0
    %1223 = vmatpush1.msra.mxu0 0.0
    %1224 = vmatprep.subr.mxu0 0.0
    %1225 = vmatpush1.msra.mxu0 0.0
    %1226 = vmatprep.subr.mxu0 0.0
    %1227 = vmatpush1.msra.mxu0 0.0
    %1228 = vmatprep.subr.mxu0 0.0
    %1229 = vmatpush1.msra.mxu0 0.0
    %1230 = vmatprep.subr.mxu0 0.0
    %1231 = vmatpush1.msra.mxu0 0.0
    %1232 = vmatprep.subr.mxu0 0.0
    %1233 = vmatpush1.msra.mxu0 0.0
    %1234 = vmatprep.subr.mxu0 0.0
    %1235 = vmatpush1.msra.mxu0 0.0
    %1236 = vmatprep.subr.mxu0 0.0
    %1237 = vmatpush1.msra.mxu0 0.0
    %1238 = vmatprep.subr.mxu0 0.0
    %1239 = vmatpush1.msra.mxu0 0.0
    %1240 = vmatprep.subr.mxu0 0.0
    %1241 = vmatpush1.msra.mxu0 0.0
    %1242 = vmatprep.subr.mxu0 0.0
    %1243 = vmatpush1.msra.mxu0 0.0
    %1244 = vmatprep.subr.mxu0 0.0
    %1245 = vmatpush1.msra.mxu0 0.0
    %1246 = vmatprep.subr.mxu0 0.0
    %1247 = vmatpush1.msra.mxu0 0.0
    %1248 = vmatprep.subr.mxu0 0.0
    %1249 = vmatpush1.msra.mxu0 0.0
    %1250 = vmatprep.subr.mxu0 0.0
    %1251 = vmatpush1.msra.mxu0 0.0
    %1252 = vmatprep.subr.mxu0 0.0
    %1253 = vmatpush1.msra.mxu0 0.0
    %1254 = vmatprep.mubr.f32.mxu0 0.0
    %1255 = vmatmul.mubr.f32.gmra.mrb[0].mxu0 %v1118
    %v1256 = vpop.f32.mrb[0].mxu0
    %v1257 = vadd.f32 %v459, %v1256
    %v1258 = vpop.f32.mrb[0].mxu0
    %1259 = vdwg.mxu0
    %v1260 = vadd.f32 %v270, %v1186
    %v1261 = vxor.u32 %v1260, 2147483648
    %v1262 = vmul.f32 %v1261, 1.442695
    %v1263 = vpow.pop %v1262
    %v1264 = vadd.f32 %v1263, 1.0
    %v1265 = vrcp.pop %v1264
    %v1266 = vmul.f32 1.0, %v1265
    %v1267 = vadd.f32 %v272, %v1188
    %v1268 = vxor.u32 %v1267, 2147483648
    %v1269 = vmul.f32 %v1268, 1.442695
    %v1270 = vpow.pop %v1269
    %v1271 = vadd.f32 %v1270, 1.0
    %v1272 = vrcp.pop %v1271
    %v1273 = vmul.f32 1.0, %v1272
    %v1274 = vmul.f32 %v1266, %v1257
    %v1275 = vadd.f32 %v379, %v1274
    %v1276 = vtanh.pop %v1275
    %v1277 = vsub.f32 1.0, %v1273
    %v1278 = vmul.f32 %v1277, %v1276
    %v1279 = vmul.f32 %v1273, %v1118
    %v1280 = vadd.f32 %v1278, %v1279
    %vm1281 = vcmp.gt.f32.partialorder %v446, 4.0
    %v1282 = vsel %vm1281, %v1280, %v1118
    %1283 = vmatprep.subr.mxu0 %v398
    %1284 = vmatpush1.msra.mxu0 %v397
    %1285 = vmatprep.subr.mxu0 %v401
    %1286 = vmatpush1.msra.mxu0 %v400
    %1287 = vmatprep.subr.mxu0 %v404
    %1288 = vmatpush1.msra.mxu0 %v403
    %1289 = vmatprep.subr.mxu0 %v407
    %1290 = vmatpush1.msra.mxu0 %v406
    %1291 = vmatprep.subr.mxu0 %v410
    %1292 = vmatpush1.msra.mxu0 %v409
    %1293 = vmatprep.subr.mxu0 %v413
    %1294 = vmatpush1.msra.mxu0 %v412
    %1295 = vmatprep.subr.mxu0 %v416
    %1296 = vmatpush1.msra.mxu0 %v415
    %1297 = vmatprep.subr.mxu0 %v419
    %1298 = vmatpush1.msra.mxu0 %v418
    %1299 = vmatprep.subr.mxu0 %v422
    %1300 = vmatpush1.msra.mxu0 %v421
    %1301 = vmatprep.subr.mxu0 %v425
    %1302 = vmatpush1.msra.mxu0 %v424
    %1303 = vmatprep.subr.mxu0 %v428
    %1304 = vmatpush1.msra.mxu0 %v427
    %1305 = vmatprep.subr.mxu0 %v431
    %1306 = vmatpush1.msra.mxu0 %v430
    %1307 = vmatprep.subr.mxu0 %v434
    %1308 = vmatpush1.msra.mxu0 %v433
    %1309 = vmatprep.subr.mxu0 %v437
    %1310 = vmatpush1.msra.mxu0 %v436
    %1311 = vmatprep.subr.mxu0 %v440
    %1312 = vmatpush1.msra.mxu0 %v439
    %1313 = vmatprep.subr.mxu0 %v443
    %1314 = vmatpush1.msra.mxu0 %v442
    %1315 = vmatprep.subr.mxu0 0.0
    %1316 = vmatpush1.msra.mxu0 0.0
    %1317 = vmatprep.subr.mxu0 0.0
    %1318 = vmatpush1.msra.mxu0 0.0
    %1319 = vmatprep.subr.mxu0 0.0
    %1320 = vmatpush1.msra.mxu0 0.0
    %1321 = vmatprep.subr.mxu0 0.0
    %1322 = vmatpush1.msra.mxu0 0.0
    %1323 = vmatprep.subr.mxu0 0.0
    %1324 = vmatpush1.msra.mxu0 0.0
    %1325 = vmatprep.subr.mxu0 0.0
    %1326 = vmatpush1.msra.mxu0 0.0
    %1327 = vmatprep.subr.mxu0 0.0
    %1328 = vmatpush1.msra.mxu0 0.0
    %1329 = vmatprep.subr.mxu0 0.0
    %1330 = vmatpush1.msra.mxu0 0.0
    %1331 = vmatprep.subr.mxu0 0.0
    %1332 = vmatpush1.msra.mxu0 0.0
    %1333 = vmatprep.subr.mxu0 0.0
    %1334 = vmatpush1.msra.mxu0 0.0
    %1335 = vmatprep.subr.mxu0 0.0
    %1336 = vmatpush1.msra.mxu0 0.0
    %1337 = vmatprep.subr.mxu0 0.0
    %1338 = vmatpush1.msra.mxu0 0.0
    %1339 = vmatprep.subr.mxu0 0.0
    %1340 = vmatpush1.msra.mxu0 0.0
    %1341 = vmatprep.subr.mxu0 0.0
    %1342 = vmatpush1.msra.mxu0 0.0
    %1343 = vmatprep.subr.mxu0 0.0
    %1344 = vmatpush1.msra.mxu0 0.0
    %1345 = vmatprep.subr.mxu0 0.0
    %1346 = vmatpush1.msra.mxu0 0.0
    %1347 = vmatprep.mubr.f32.mxu0 0.0
    %1348 = vmatmul.mubr.f32.gmra.mrb[0].mxu0 %v1282
    %v1349 = vpop.f32.mrb[0].mxu0
    %v1350 = vadd.f32 %v451, %v1349
    %v1351 = vpop.f32.mrb[0].mxu0
    %v1352 = vadd.f32 %v455, %v1351
    %1353 = vdwg.mxu0
    %1354 = vmatprep.subr.mxu0 0.0
    %1355 = vmatpush1.msra.mxu0 %v399
    %1356 = vmatprep.subr.mxu0 0.0
    %1357 = vmatpush1.msra.mxu0 %v402
    %1358 = vmatprep.subr.mxu0 0.0
    %1359 = vmatpush1.msra.mxu0 %v405
    %1360 = vmatprep.subr.mxu0 0.0
    %1361 = vmatpush1.msra.mxu0 %v408
    %1362 = vmatprep.subr.mxu0 0.0
    %1363 = vmatpush1.msra.mxu0 %v411
    %1364 = vmatprep.subr.mxu0 0.0
    %1365 = vmatpush1.msra.mxu0 %v414
    %1366 = vmatprep.subr.mxu0 0.0
    %1367 = vmatpush1.msra.mxu0 %v417
    %1368 = vmatprep.subr.mxu0 0.0
    %1369 = vmatpush1.msra.mxu0 %v420
    %1370 = vmatprep.subr.mxu0 0.0
    %1371 = vmatpush1.msra.mxu0 %v423
    %1372 = vmatprep.subr.mxu0 0.0
    %1373 = vmatpush1.msra.mxu0 %v426
    %1374 = vmatprep.subr.mxu0 0.0
    %1375 = vmatpush1.msra.mxu0 %v429
    %1376 = vmatprep.subr.mxu0 0.0
    %1377 = vmatpush1.msra.mxu0 %v432
    %1378 = vmatprep.subr.mxu0 0.0
    %1379 = vmatpush1.msra.mxu0 %v435
    %1380 = vmatprep.subr.mxu0 0.0
    %1381 = vmatpush1.msra.mxu0 %v438
    %1382 = vmatprep.subr.mxu0 0.0
    %1383 = vmatpush1.msra.mxu0 %v441
    %1384 = vmatprep.subr.mxu0 0.0
    %1385 = vmatpush1.msra.mxu0 %v444
    %1386 = vmatprep.subr.mxu0 0.0
    %1387 = vmatpush1.msra.mxu0 0.0
    %1388 = vmatprep.subr.mxu0 0.0
    %1389 = vmatpush1.msra.mxu0 0.0
    %1390 = vmatprep.subr.mxu0 0.0
    %1391 = vmatpush1.msra.mxu0 0.0
    %1392 = vmatprep.subr.mxu0 0.0
    %1393 = vmatpush1.msra.mxu0 0.0
    %1394 = vmatprep.subr.mxu0 0.0
    %1395 = vmatpush1.msra.mxu0 0.0
    %1396 = vmatprep.subr.mxu0 0.0
    %1397 = vmatpush1.msra.mxu0 0.0
    %1398 = vmatprep.subr.mxu0 0.0
    %1399 = vmatpush1.msra.mxu0 0.0
    %1400 = vmatprep.subr.mxu0 0.0
    %1401 = vmatpush1.msra.mxu0 0.0
    %1402 = vmatprep.subr.mxu0 0.0
    %1403 = vmatpush1.msra.mxu0 0.0
    %1404 = vmatprep.subr.mxu0 0.0
    %1405 = vmatpush1.msra.mxu0 0.0
    %1406 = vmatprep.subr.mxu0 0.0
    %1407 = vmatpush1.msra.mxu0 0.0
    %1408 = vmatprep.subr.mxu0 0.0
    %1409 = vmatpush1.msra.mxu0 0.0
    %1410 = vmatprep.subr.mxu0 0.0
    %1411 = vmatpush1.msra.mxu0 0.0
    %1412 = vmatprep.subr.mxu0 0.0
    %1413 = vmatpush1.msra.mxu0 0.0
    %1414 = vmatprep.subr.mxu0 0.0
    %1415 = vmatpush1.msra.mxu0 0.0
    %1416 = vmatprep.subr.mxu0 0.0
    %1417 = vmatpush1.msra.mxu0 0.0
    %1418 = vmatprep.mubr.f32.mxu0 0.0
    %1419 = vmatmul.mubr.f32.gmra.mrb[0].mxu0 %v1282
    %v1420 = vpop.f32.mrb[0].mxu0
    %v1421 = vadd.f32 %v459, %v1420
    %v1422 = vpop.f32.mrb[0].mxu0
    %1423 = vdwg.mxu0
    %v1424 = vadd.f32 %v276, %v1350
    %v1425 = vxor.u32 %v1424, 2147483648
    %v1426 = vmul.f32 %v1425, 1.442695
    %v1427 = vpow.pop %v1426
    %v1428 = vadd.f32 %v1427, 1.0
    %v1429 = vrcp.pop %v1428
    %v1430 = vmul.f32 1.0, %v1429
    %v1431 = vadd.f32 %v278, %v1352
    %v1432 = vxor.u32 %v1431, 2147483648
    %v1433 = vmul.f32 %v1432, 1.442695
    %v1434 = vpow.pop %v1433
    %v1435 = vadd.f32 %v1434, 1.0
    %v1436 = vrcp.pop %v1435
    %v1437 = vmul.f32 1.0, %v1436
    %v1438 = vmul.f32 %v1430, %v1421
    %v1439 = vadd.f32 %v384, %v1438
    %v1440 = vtanh.pop %v1439
    %v1441 = vsub.f32 1.0, %v1437
    %v1442 = vmul.f32 %v1441, %v1440
    %v1443 = vmul.f32 %v1437, %v1282
    %v1444 = vadd.f32 %v1442, %v1443
    %vm1445 = vcmp.gt.f32.partialorder %v446, 5.0
    %v1446 = vsel %vm1445, %v1444, %v1282
    %1447 = vmatprep.subr.mxu0 %v398
    %1448 = vmatpush1.msra.mxu0 %v397
    %1449 = vmatprep.subr.mxu0 %v401
    %1450 = vmatpush1.msra.mxu0 %v400
    %1451 = vmatprep.subr.mxu0 %v404
    %1452 = vmatpush1.msra.mxu0 %v403
    %1453 = vmatprep.subr.mxu0 %v407
    %1454 = vmatpush1.msra.mxu0 %v406
    %1455 = vmatprep.subr.mxu0 %v410
    %1456 = vmatpush1.msra.mxu0 %v409
    %1457 = vmatprep.subr.mxu0 %v413
    %1458 = vmatpush1.msra.mxu0 %v412
    %1459 = vmatprep.subr.mxu0 %v416
    %1460 = vmatpush1.msra.mxu0 %v415
    %1461 = vmatprep.subr.mxu0 %v419
    %1462 = vmatpush1.msra.mxu0 %v418
    %1463 = vmatprep.subr.mxu0 %v422
    %1464 = vmatpush1.msra.mxu0 %v421
    %1465 = vmatprep.subr.mxu0 %v425
    %1466 = vmatpush1.msra.mxu0 %v424
    %1467 = vmatprep.subr.mxu0 %v428
    %1468 = vmatpush1.msra.mxu0 %v427
    %1469 = vmatprep.subr.mxu0 %v431
    %1470 = vmatpush1.msra.mxu0 %v430
    %1471 = vmatprep.subr.mxu0 %v434
    %1472 = vmatpush1.msra.mxu0 %v433
    %1473 = vmatprep.subr.mxu0 %v437
    %1474 = vmatpush1.msra.mxu0 %v436
    %1475 = vmatprep.subr.mxu0 %v440
    %1476 = vmatpush1.msra.mxu0 %v439
    %1477 = vmatprep.subr.mxu0 %v443
    %1478 = vmatpush1.msra.mxu0 %v442
    %1479 = vmatprep.subr.mxu0 0.0
    %1480 = vmatpush1.msra.mxu0 0.0
    %1481 = vmatprep.subr.mxu0 0.0
    %1482 = vmatpush1.msra.mxu0 0.0
    %1483 = vmatprep.subr.mxu0 0.0
    %1484 = vmatpush1.msra.mxu0 0.0
    %1485 = vmatprep.subr.mxu0 0.0
    %1486 = vmatpush1.msra.mxu0 0.0
    %1487 = vmatprep.subr.mxu0 0.0
    %1488 = vmatpush1.msra.mxu0 0.0
    %1489 = vmatprep.subr.mxu0 0.0
    %1490 = vmatpush1.msra.mxu0 0.0
    %1491 = vmatprep.subr.mxu0 0.0
    %1492 = vmatpush1.msra.mxu0 0.0
    %1493 = vmatprep.subr.mxu0 0.0
    %1494 = vmatpush1.msra.mxu0 0.0
    %1495 = vmatprep.subr.mxu0 0.0
    %1496 = vmatpush1.msra.mxu0 0.0
    %1497 = vmatprep.subr.mxu0 0.0
    %1498 = vmatpush1.msra.mxu0 0.0
    %1499 = vmatprep.subr.mxu0 0.0
    %1500 = vmatpush1.msra.mxu0 0.0
    %1501 = vmatprep.subr.mxu0 0.0
    %1502 = vmatpush1.msra.mxu0 0.0
    %1503 = vmatprep.subr.mxu0 0.0
    %1504 = vmatpush1.msra.mxu0 0.0
    %1505 = vmatprep.subr.mxu0 0.0
    %1506 = vmatpush1.msra.mxu0 0.0
    %1507 = vmatprep.subr.mxu0 0.0
    %1508 = vmatpush1.msra.mxu0 0.0
    %1509 = vmatprep.subr.mxu0 0.0
    %1510 = vmatpush1.msra.mxu0 0.0
    %1511 = vmatprep.mubr.f32.mxu0 0.0
    %1512 = vmatmul.mubr.f32.gmra.mrb[0].mxu0 %v1446
    %v1513 = vpop.f32.mrb[0].mxu0
    %v1514 = vadd.f32 %v451, %v1513
    %v1515 = vpop.f32.mrb[0].mxu0
    %v1516 = vadd.f32 %v455, %v1515
    %1517 = vdwg.mxu0
    %1518 = vmatprep.subr.mxu0 0.0
    %1519 = vmatpush1.msra.mxu0 %v399
    %1520 = vmatprep.subr.mxu0 0.0
    %1521 = vmatpush1.msra.mxu0 %v402
    %1522 = vmatprep.subr.mxu0 0.0
    %1523 = vmatpush1.msra.mxu0 %v405
    %1524 = vmatprep.subr.mxu0 0.0
    %1525 = vmatpush1.msra.mxu0 %v408
    %1526 = vmatprep.subr.mxu0 0.0
    %1527 = vmatpush1.msra.mxu0 %v411
    %1528 = vmatprep.subr.mxu0 0.0
    %1529 = vmatpush1.msra.mxu0 %v414
    %1530 = vmatprep.subr.mxu0 0.0
    %1531 = vmatpush1.msra.mxu0 %v417
    %1532 = vmatprep.subr.mxu0 0.0
    %1533 = vmatpush1.msra.mxu0 %v420
    %1534 = vmatprep.subr.mxu0 0.0
    %1535 = vmatpush1.msra.mxu0 %v423
    %1536 = vmatprep.subr.mxu0 0.0
    %1537 = vmatpush1.msra.mxu0 %v426
    %1538 = vmatprep.subr.mxu0 0.0
    %1539 = vmatpush1.msra.mxu0 %v429
    %1540 = vmatprep.subr.mxu0 0.0
    %1541 = vmatpush1.msra.mxu0 %v432
    %1542 = vmatprep.subr.mxu0 0.0
    %1543 = vmatpush1.msra.mxu0 %v435
    %1544 = vmatprep.subr.mxu0 0.0
    %1545 = vmatpush1.msra.mxu0 %v438
    %1546 = vmatprep.subr.mxu0 0.0
    %1547 = vmatpush1.msra.mxu0 %v441
    %1548 = vmatprep.subr.mxu0 0.0
    %1549 = vmatpush1.msra.mxu0 %v444
    %1550 = vmatprep.subr.mxu0 0.0
    %1551 = vmatpush1.msra.mxu0 0.0
    %1552 = vmatprep.subr.mxu0 0.0
    %1553 = vmatpush1.msra.mxu0 0.0
    %1554 = vmatprep.subr.mxu0 0.0
    %1555 = vmatpush1.msra.mxu0 0.0
    %1556 = vmatprep.subr.mxu0 0.0
    %1557 = vmatpush1.msra.mxu0 0.0
    %1558 = vmatprep.subr.mxu0 0.0
    %1559 = vmatpush1.msra.mxu0 0.0
    %1560 = vmatprep.subr.mxu0 0.0
    %1561 = vmatpush1.msra.mxu0 0.0
    %1562 = vmatprep.subr.mxu0 0.0
    %1563 = vmatpush1.msra.mxu0 0.0
    %1564 = vmatprep.subr.mxu0 0.0
    %1565 = vmatpush1.msra.mxu0 0.0
    %1566 = vmatprep.subr.mxu0 0.0
    %1567 = vmatpush1.msra.mxu0 0.0
    %1568 = vmatprep.subr.mxu0 0.0
    %1569 = vmatpush1.msra.mxu0 0.0
    %1570 = vmatprep.subr.mxu0 0.0
    %1571 = vmatpush1.msra.mxu0 0.0
    %1572 = vmatprep.subr.mxu0 0.0
    %1573 = vmatpush1.msra.mxu0 0.0
    %1574 = vmatprep.subr.mxu0 0.0
    %1575 = vmatpush1.msra.mxu0 0.0
    %1576 = vmatprep.subr.mxu0 0.0
    %1577 = vmatpush1.msra.mxu0 0.0
    %1578 = vmatprep.subr.mxu0 0.0
    %1579 = vmatpush1.msra.mxu0 0.0
    %1580 = vmatprep.subr.mxu0 0.0
    %1581 = vmatpush1.msra.mxu0 0.0
    %1582 = vmatprep.mubr.f32.mxu0 0.0
    %1583 = vmatmul.mubr.f32.gmra.mrb[0].mxu0 %v1446
    %v1584 = vpop.f32.mrb[0].mxu0
    %v1585 = vadd.f32 %v459, %v1584
    %v1586 = vpop.f32.mrb[0].mxu0
    %1587 = vdwg.mxu0
    %v1588 = vadd.f32 %v282, %v1514
    %v1589 = vxor.u32 %v1588, 2147483648
    %v1590 = vmul.f32 %v1589, 1.442695
    %v1591 = vpow.pop %v1590
    %v1592 = vadd.f32 %v1591, 1.0
    %v1593 = vrcp.pop %v1592
    %v1594 = vmul.f32 1.0, %v1593
    %v1595 = vadd.f32 %v284, %v1516
    %v1596 = vxor.u32 %v1595, 2147483648
    %v1597 = vmul.f32 %v1596, 1.442695
    %v1598 = vpow.pop %v1597
    %v1599 = vadd.f32 %v1598, 1.0
    %v1600 = vrcp.pop %v1599
    %v1601 = vmul.f32 1.0, %v1600
    %v1602 = vmul.f32 %v1594, %v1585
    %v1603 = vadd.f32 %v389, %v1602
    %v1604 = vtanh.pop %v1603
    %v1605 = vsub.f32 1.0, %v1601
    %v1606 = vmul.f32 %v1605, %v1604
    %v1607 = vmul.f32 %v1601, %v1446
    %v1608 = vadd.f32 %v1606, %v1607
    %vm1609 = vcmp.gt.f32.partialorder %v446, 6.0
    %v1610 = vsel %vm1609, %v1608, %v1446
    %1611 = vmatprep.subr.mxu0 %v398
    %1612 = vmatpush1.msra.mxu0 %v397
    %1613 = vmatprep.subr.mxu0 %v401
    %1614 = vmatpush1.msra.mxu0 %v400
    %1615 = vmatprep.subr.mxu0 %v404
    %1616 = vmatpush1.msra.mxu0 %v403
    %1617 = vmatprep.subr.mxu0 %v407
    %1618 = vmatpush1.msra.mxu0 %v406
    %1619 = vmatprep.subr.mxu0 %v410
    %1620 = vmatpush1.msra.mxu0 %v409
    %1621 = vmatprep.subr.mxu0 %v413
    %1622 = vmatpush1.msra.mxu0 %v412
    %1623 = vmatprep.subr.mxu0 %v416
    %1624 = vmatpush1.msra.mxu0 %v415
    %1625 = vmatprep.subr.mxu0 %v419
    %1626 = vmatpush1.msra.mxu0 %v418
    %1627 = vmatprep.subr.mxu0 %v422
    %1628 = vmatpush1.msra.mxu0 %v421
    %1629 = vmatprep.subr.mxu0 %v425
    %1630 = vmatpush1.msra.mxu0 %v424
    %1631 = vmatprep.subr.mxu0 %v428
    %1632 = vmatpush1.msra.mxu0 %v427
    %1633 = vmatprep.subr.mxu0 %v431
    %1634 = vmatpush1.msra.mxu0 %v430
    %1635 = vmatprep.subr.mxu0 %v434
    %1636 = vmatpush1.msra.mxu0 %v433
    %1637 = vmatprep.subr.mxu0 %v437
    %1638 = vmatpush1.msra.mxu0 %v436
    %1639 = vmatprep.subr.mxu0 %v440
    %1640 = vmatpush1.msra.mxu0 %v439
    %1641 = vmatprep.subr.mxu0 %v443
    %1642 = vmatpush1.msra.mxu0 %v442
    %1643 = vmatprep.subr.mxu0 0.0
    %1644 = vmatpush1.msra.mxu0 0.0
    %1645 = vmatprep.subr.mxu0 0.0
    %1646 = vmatpush1.msra.mxu0 0.0
    %1647 = vmatprep.subr.mxu0 0.0
    %1648 = vmatpush1.msra.mxu0 0.0
    %1649 = vmatprep.subr.mxu0 0.0
    %1650 = vmatpush1.msra.mxu0 0.0
    %1651 = vmatprep.subr.mxu0 0.0
    %1652 = vmatpush1.msra.mxu0 0.0
    %1653 = vmatprep.subr.mxu0 0.0
    %1654 = vmatpush1.msra.mxu0 0.0
    %1655 = vmatprep.subr.mxu0 0.0
    %1656 = vmatpush1.msra.mxu0 0.0
    %1657 = vmatprep.subr.mxu0 0.0
    %1658 = vmatpush1.msra.mxu0 0.0
    %1659 = vmatprep.subr.mxu0 0.0
    %1660 = vmatpush1.msra.mxu0 0.0
    %1661 = vmatprep.subr.mxu0 0.0
    %1662 = vmatpush1.msra.mxu0 0.0
    %1663 = vmatprep.subr.mxu0 0.0
    %1664 = vmatpush1.msra.mxu0 0.0
    %1665 = vmatprep.subr.mxu0 0.0
    %1666 = vmatpush1.msra.mxu0 0.0
    %1667 = vmatprep.subr.mxu0 0.0
    %1668 = vmatpush1.msra.mxu0 0.0
    %1669 = vmatprep.subr.mxu0 0.0
    %1670 = vmatpush1.msra.mxu0 0.0
    %1671 = vmatprep.subr.mxu0 0.0
    %1672 = vmatpush1.msra.mxu0 0.0
    %1673 = vmatprep.subr.mxu0 0.0
    %1674 = vmatpush1.msra.mxu0 0.0
    %1675 = vmatprep.mubr.f32.mxu0 0.0
    %1676 = vmatmul.mubr.f32.gmra.mrb[0].mxu0 %v1610
    %v1677 = vpop.f32.mrb[0].mxu0
    %v1678 = vadd.f32 %v451, %v1677
    %v1679 = vpop.f32.mrb[0].mxu0
    %v1680 = vadd.f32 %v455, %v1679
    %1681 = vdwg.mxu0
    %1682 = vmatprep.subr.mxu0 0.0
    %1683 = vmatpush1.msra.mxu0 %v399
    %1684 = vmatprep.subr.mxu0 0.0
    %1685 = vmatpush1.msra.mxu0 %v402
    %1686 = vmatprep.subr.mxu0 0.0
    %1687 = vmatpush1.msra.mxu0 %v405
    %1688 = vmatprep.subr.mxu0 0.0
    %1689 = vmatpush1.msra.mxu0 %v408
    %1690 = vmatprep.subr.mxu0 0.0
    %1691 = vmatpush1.msra.mxu0 %v411
    %1692 = vmatprep.subr.mxu0 0.0
    %1693 = vmatpush1.msra.mxu0 %v414
    %1694 = vmatprep.subr.mxu0 0.0
    %1695 = vmatpush1.msra.mxu0 %v417
    %1696 = vmatprep.subr.mxu0 0.0
    %1697 = vmatpush1.msra.mxu0 %v420
    %1698 = vmatprep.subr.mxu0 0.0
    %1699 = vmatpush1.msra.mxu0 %v423
    %1700 = vmatprep.subr.mxu0 0.0
    %1701 = vmatpush1.msra.mxu0 %v426
    %1702 = vmatprep.subr.mxu0 0.0
    %1703 = vmatpush1.msra.mxu0 %v429
    %1704 = vmatprep.subr.mxu0 0.0
    %1705 = vmatpush1.msra.mxu0 %v432
    %1706 = vmatprep.subr.mxu0 0.0
    %1707 = vmatpush1.msra.mxu0 %v435
    %1708 = vmatprep.subr.mxu0 0.0
    %1709 = vmatpush1.msra.mxu0 %v438
    %1710 = vmatprep.subr.mxu0 0.0
    %1711 = vmatpush1.msra.mxu0 %v441
    %1712 = vmatprep.subr.mxu0 0.0
    %1713 = vmatpush1.msra.mxu0 %v444
    %1714 = vmatprep.subr.mxu0 0.0
    %1715 = vmatpush1.msra.mxu0 0.0
    %1716 = vmatprep.subr.mxu0 0.0
    %1717 = vmatpush1.msra.mxu0 0.0
    %1718 = vmatprep.subr.mxu0 0.0
    %1719 = vmatpush1.msra.mxu0 0.0
    %1720 = vmatprep.subr.mxu0 0.0
    %1721 = vmatpush1.msra.mxu0 0.0
    %1722 = vmatprep.subr.mxu0 0.0
    %1723 = vmatpush1.msra.mxu0 0.0
    %1724 = vmatprep.subr.mxu0 0.0
    %1725 = vmatpush1.msra.mxu0 0.0
    %1726 = vmatprep.subr.mxu0 0.0
    %1727 = vmatpush1.msra.mxu0 0.0
    %1728 = vmatprep.subr.mxu0 0.0
    %1729 = vmatpush1.msra.mxu0 0.0
    %1730 = vmatprep.subr.mxu0 0.0
    %1731 = vmatpush1.msra.mxu0 0.0
    %1732 = vmatprep.subr.mxu0 0.0
    %1733 = vmatpush1.msra.mxu0 0.0
    %1734 = vmatprep.subr.mxu0 0.0
    %1735 = vmatpush1.msra.mxu0 0.0
    %1736 = vmatprep.subr.mxu0 0.0
    %1737 = vmatpush1.msra.mxu0 0.0
    %1738 = vmatprep.subr.mxu0 0.0
    %1739 = vmatpush1.msra.mxu0 0.0
    %1740 = vmatprep.subr.mxu0 0.0
    %1741 = vmatpush1.msra.mxu0 0.0
    %1742 = vmatprep.subr.mxu0 0.0
    %1743 = vmatpush1.msra.mxu0 0.0
    %1744 = vmatprep.subr.mxu0 0.0
    %1745 = vmatpush1.msra.mxu0 0.0
    %1746 = vmatprep.mubr.f32.mxu0 0.0
    %1747 = vmatmul.mubr.f32.gmra.mrb[0].mxu0 %v1610
    %v1748 = vpop.f32.mrb[0].mxu0
    %v1749 = vadd.f32 %v459, %v1748
    %v1750 = vpop.f32.mrb[0].mxu0
    %1751 = vdwg.mxu0
    %v1752 = vadd.f32 %v288, %v1678
    %v1753 = vxor.u32 %v1752, 2147483648
    %v1754 = vmul.f32 %v1753, 1.442695
    %v1755 = vpow.pop %v1754
    %v1756 = vadd.f32 %v1755, 1.0
    %v1757 = vrcp.pop %v1756
    %v1758 = vmul.f32 1.0, %v1757
    %v1759 = vadd.f32 %v290, %v1680
    %v1760 = vxor.u32 %v1759, 2147483648
    %v1761 = vmul.f32 %v1760, 1.442695
    %v1762 = vpow.pop %v1761
    %v1763 = vadd.f32 %v1762, 1.0
    %v1764 = vrcp.pop %v1763
    %v1765 = vmul.f32 1.0, %v1764
    %v1766 = vmul.f32 %v1758, %v1749
    %v1767 = vadd.f32 %v394, %v1766
    %v1768 = vtanh.pop %v1767
    %v1769 = vsub.f32 1.0, %v1765
    %v1770 = vmul.f32 %v1769, %v1768
    %v1771 = vmul.f32 %v1765, %v1610
    %v1772 = vadd.f32 %v1770, %v1771
    %vm1773 = vcmp.gt.f32.partialorder %v446, 7.0
    %v1774 = vsel %vm1773, %v1772, %v1610
    %v1775 = vlaneseq
    %v1776 = vand.u32 %v1775, 127
    %v1777 = vld [vmem:[#allocation10] sm:$0xff]
    %vm1778 = vcmask 64512
    %v1780 = vsel %vm1778, %v1777, 0
    %1782 = vmatprep.subr.mxu0 0.0
    %1783 = vmatpush1.msra.mxu0 %v1774
    %1784 = vmatprep.subr.mxu0 0.0
    %1785 = vmatpush1.msra.mxu0 0.0
    %1786 = vmatprep.subr.mxu0 0.0
    %1787 = vmatpush1.msra.mxu0 0.0
    %1788 = vmatprep.subr.mxu0 0.0
    %1789 = vmatpush1.msra.mxu0 0.0
    %1790 = vmatprep.subr.mxu0 0.0
    %1791 = vmatpush1.msra.mxu0 0.0
    %1792 = vmatprep.subr.mxu0 0.0
    %1793 = vmatpush1.msra.mxu0 0.0
    %1794 = vmatprep.subr.mxu0 0.0
    %1795 = vmatpush1.msra.mxu0 0.0
    %1796 = vmatprep.subr.mxu0 0.0
    %1797 = vmatpush1.msra.mxu0 0.0
    %1798 = vmatprep.subr.mxu0 0.0
    %1799 = vmatpush1.msra.mxu0 0.0
    %1800 = vmatprep.subr.mxu0 0.0
    %1801 = vmatpush1.msra.mxu0 0.0
    %1802 = vmatprep.subr.mxu0 0.0
    %1803 = vmatpush1.msra.mxu0 0.0
    %1804 = vmatprep.subr.mxu0 0.0
    %1805 = vmatpush1.msra.mxu0 0.0
    %1806 = vmatprep.subr.mxu0 0.0
    %1807 = vmatpush1.msra.mxu0 0.0
    %1808 = vmatprep.subr.mxu0 0.0
    %1809 = vmatpush1.msra.mxu0 0.0
    %1810 = vmatprep.subr.mxu0 0.0
    %1811 = vmatpush1.msra.mxu0 0.0
    %1812 = vmatprep.subr.mxu0 0.0
    %1813 = vmatpush1.msra.mxu0 0.0
    %1814 = vmatprep.subr.mxu0 0.0
    %1815 = vmatpush1.msra.mxu0 0.0
    %1816 = vmatprep.subr.mxu0 0.0
    %1817 = vmatpush1.msra.mxu0 0.0
    %1818 = vmatprep.subr.mxu0 0.0
    %1819 = vmatpush1.msra.mxu0 0.0
    %1820 = vmatprep.subr.mxu0 0.0
    %1821 = vmatpush1.msra.mxu0 0.0
    %1822 = vmatprep.subr.mxu0 0.0
    %1823 = vmatpush1.msra.mxu0 0.0
    %1824 = vmatprep.subr.mxu0 0.0
    %1825 = vmatpush1.msra.mxu0 0.0
    %1826 = vmatprep.subr.mxu0 0.0
    %1827 = vmatpush1.msra.mxu0 0.0
    %1828 = vmatprep.subr.mxu0 0.0
    %1829 = vmatpush1.msra.mxu0 0.0
    %1830 = vmatprep.subr.mxu0 0.0
    %1831 = vmatpush1.msra.mxu0 0.0
    %1832 = vmatprep.subr.mxu0 0.0
    %1833 = vmatpush1.msra.mxu0 0.0
    %1834 = vmatprep.subr.mxu0 0.0
    %1835 = vmatpush1.msra.mxu0 0.0
    %1836 = vmatprep.subr.mxu0 0.0
    %1837 = vmatpush1.msra.mxu0 0.0
    %1838 = vmatprep.subr.mxu0 0.0
    %1839 = vmatpush1.msra.mxu0 0.0
    %1840 = vmatprep.subr.mxu0 0.0
    %1841 = vmatpush1.msra.mxu0 0.0
    %1842 = vmatprep.subr.mxu0 0.0
    %1843 = vmatpush1.msra.mxu0 0.0
    %1844 = vmatprep.subr.mxu0 0.0
    %1845 = vmatpush1.msra.mxu0 0.0
    %1846 = vmatprep.mubr.f32.mxu0 0.0
    %1847 = vmatmul.mubr.f32.gmra.mrb[0].mxu0 %v1780
    %v1848 = vpop.f32.mrb[0].mxu0
    %v1849 = vadd.f32 0.0, %v1848
    %v1850 = vpop.f32.mrb[0].mxu0
    %1851 = vdwg.mxu0
    %vm1852 = vcmp.ge.s32.totalorder %v1776, 0
    %vm1853 = vcmp.lt.s32.totalorder %v1776, 8
    %vm1854 = vmand %vm1852, %vm1853
    %v1855 = vsel %vm1854, %v1849, 0.0
    %s1856 = scalar_lea.vmem [#allocation10], 8
    %v1857 = vld [vmem:[%s1856] sm:$0xff]
    %v1859 = vsel %vm1778, %v1857, 0
    %1861 = vmatprep.subr.mxu0 0.0
    %1862 = vmatpush1.msra.mxu0 %v1774
    %1863 = vmatprep.subr.mxu0 0.0
    %1864 = vmatpush1.msra.mxu0 0.0
    %1865 = vmatprep.subr.mxu0 0.0
    %1866 = vmatpush1.msra.mxu0 0.0
    %1867 = vmatprep.subr.mxu0 0.0
    %1868 = vmatpush1.msra.mxu0 0.0
    %1869 = vmatprep.subr.mxu0 0.0
    %1870 = vmatpush1.msra.mxu0 0.0
    %1871 = vmatprep.subr.mxu0 0.0
    %1872 = vmatpush1.msra.mxu0 0.0
    %1873 = vmatprep.subr.mxu0 0.0
    %1874 = vmatpush1.msra.mxu0 0.0
    %1875 = vmatprep.subr.mxu0 0.0
    %1876 = vmatpush1.msra.mxu0 0.0
    %1877 = vmatprep.subr.mxu0 0.0
    %1878 = vmatpush1.msra.mxu0 0.0
    %1879 = vmatprep.subr.mxu0 0.0
    %1880 = vmatpush1.msra.mxu0 0.0
    %1881 = vmatprep.subr.mxu0 0.0
    %1882 = vmatpush1.msra.mxu0 0.0
    %1883 = vmatprep.subr.mxu0 0.0
    %1884 = vmatpush1.msra.mxu0 0.0
    %1885 = vmatprep.subr.mxu0 0.0
    %1886 = vmatpush1.msra.mxu0 0.0
    %1887 = vmatprep.subr.mxu0 0.0
    %1888 = vmatpush1.msra.mxu0 0.0
    %1889 = vmatprep.subr.mxu0 0.0
    %1890 = vmatpush1.msra.mxu0 0.0
    %1891 = vmatprep.subr.mxu0 0.0
    %1892 = vmatpush1.msra.mxu0 0.0
    %1893 = vmatprep.subr.mxu0 0.0
    %1894 = vmatpush1.msra.mxu0 0.0
    %1895 = vmatprep.subr.mxu0 0.0
    %1896 = vmatpush1.msra.mxu0 0.0
    %1897 = vmatprep.subr.mxu0 0.0
    %1898 = vmatpush1.msra.mxu0 0.0
    %1899 = vmatprep.subr.mxu0 0.0
    %1900 = vmatpush1.msra.mxu0 0.0
    %1901 = vmatprep.subr.mxu0 0.0
    %1902 = vmatpush1.msra.mxu0 0.0
    %1903 = vmatprep.subr.mxu0 0.0
    %1904 = vmatpush1.msra.mxu0 0.0
    %1905 = vmatprep.subr.mxu0 0.0
    %1906 = vmatpush1.msra.mxu0 0.0
    %1907 = vmatprep.subr.mxu0 0.0
    %1908 = vmatpush1.msra.mxu0 0.0
    %1909 = vmatprep.subr.mxu0 0.0
    %1910 = vmatpush1.msra.mxu0 0.0
    %1911 = vmatprep.subr.mxu0 0.0
    %1912 = vmatpush1.msra.mxu0 0.0
    %1913 = vmatprep.subr.mxu0 0.0
    %1914 = vmatpush1.msra.mxu0 0.0
    %1915 = vmatprep.subr.mxu0 0.0
    %1916 = vmatpush1.msra.mxu0 0.0
    %1917 = vmatprep.subr.mxu0 0.0
    %1918 = vmatpush1.msra.mxu0 0.0
    %1919 = vmatprep.subr.mxu0 0.0
    %1920 = vmatpush1.msra.mxu0 0.0
    %1921 = vmatprep.subr.mxu0 0.0
    %1922 = vmatpush1.msra.mxu0 0.0
    %1923 = vmatprep.subr.mxu0 0.0
    %1924 = vmatpush1.msra.mxu0 0.0
    %1925 = vmatprep.mubr.f32.mxu0 0.0
    %1926 = vmatmul.mubr.f32.gmra.mrb[0].mxu0 %v1859
    %v1927 = vpop.f32.mrb[0].mxu0
    %v1928 = vadd.f32 0.0, %v1927
    %v1929 = vpop.f32.mrb[0].mxu0
    %1930 = vdwg.mxu0
    %vm1931 = vcmp.ge.s32.totalorder %v1776, 8
    %vm1932 = vcmp.lt.s32.totalorder %v1776, 16
    %vm1933 = vmand %vm1931, %vm1932
    %v1934 = vsel %vm1933, %v1928, %v1855
    %s1935 = scalar_lea.vmem [#allocation10], 16
    %v1936 = vld [vmem:[%s1935] sm:$0xff]
    %v1938 = vsel %vm1778, %v1936, 0
    %1940 = vmatprep.subr.mxu0 0.0
    %1941 = vmatpush1.msra.mxu0 %v1774
    %1942 = vmatprep.subr.mxu0 0.0
    %1943 = vmatpush1.msra.mxu0 0.0
    %1944 = vmatprep.subr.mxu0 0.0
    %1945 = vmatpush1.msra.mxu0 0.0
    %1946 = vmatprep.subr.mxu0 0.0
    %1947 = vmatpush1.msra.mxu0 0.0
    %1948 = vmatprep.subr.mxu0 0.0
    %1949 = vmatpush1.msra.mxu0 0.0
    %1950 = vmatprep.subr.mxu0 0.0
    %1951 = vmatpush1.msra.mxu0 0.0
    %1952 = vmatprep.subr.mxu0 0.0
    %1953 = vmatpush1.msra.mxu0 0.0
    %1954 = vmatprep.subr.mxu0 0.0
    %1955 = vmatpush1.msra.mxu0 0.0
    %1956 = vmatprep.subr.mxu0 0.0
    %1957 = vmatpush1.msra.mxu0 0.0
    %1958 = vmatprep.subr.mxu0 0.0
    %1959 = vmatpush1.msra.mxu0 0.0
    %1960 = vmatprep.subr.mxu0 0.0
    %1961 = vmatpush1.msra.mxu0 0.0
    %1962 = vmatprep.subr.mxu0 0.0
    %1963 = vmatpush1.msra.mxu0 0.0
    %1964 = vmatprep.subr.mxu0 0.0
    %1965 = vmatpush1.msra.mxu0 0.0
    %1966 = vmatprep.subr.mxu0 0.0
    %1967 = vmatpush1.msra.mxu0 0.0
    %1968 = vmatprep.subr.mxu0 0.0
    %1969 = vmatpush1.msra.mxu0 0.0
    %1970 = vmatprep.subr.mxu0 0.0
    %1971 = vmatpush1.msra.mxu0 0.0
    %1972 = vmatprep.subr.mxu0 0.0
    %1973 = vmatpush1.msra.mxu0 0.0
    %1974 = vmatprep.subr.mxu0 0.0
    %1975 = vmatpush1.msra.mxu0 0.0
    %1976 = vmatprep.subr.mxu0 0.0
    %1977 = vmatpush1.msra.mxu0 0.0
    %1978 = vmatprep.subr.mxu0 0.0
    %1979 = vmatpush1.msra.mxu0 0.0
    %1980 = vmatprep.subr.mxu0 0.0
    %1981 = vmatpush1.msra.mxu0 0.0
    %1982 = vmatprep.subr.mxu0 0.0
    %1983 = vmatpush1.msra.mxu0 0.0
    %1984 = vmatprep.subr.mxu0 0.0
    %1985 = vmatpush1.msra.mxu0 0.0
    %1986 = vmatprep.subr.mxu0 0.0
    %1987 = vmatpush1.msra.mxu0 0.0
    %1988 = vmatprep.subr.mxu0 0.0
    %1989 = vmatpush1.msra.mxu0 0.0
    %1990 = vmatprep.subr.mxu0 0.0
    %1991 = vmatpush1.msra.mxu0 0.0
    %1992 = vmatprep.subr.mxu0 0.0
    %1993 = vmatpush1.msra.mxu0 0.0
    %1994 = vmatprep.subr.mxu0 0.0
    %1995 = vmatpush1.msra.mxu0 0.0
    %1996 = vmatprep.subr.mxu0 0.0
    %1997 = vmatpush1.msra.mxu0 0.0
    %1998 = vmatprep.subr.mxu0 0.0
    %1999 = vmatpush1.msra.mxu0 0.0
    %2000 = vmatprep.subr.mxu0 0.0
    %2001 = vmatpush1.msra.mxu0 0.0
    %2002 = vmatprep.subr.mxu0 0.0
    %2003 = vmatpush1.msra.mxu0 0.0
    %2004 = vmatprep.mubr.f32.mxu0 0.0
    %2005 = vmatmul.mubr.f32.gmra.mrb[0].mxu0 %v1938
    %v2006 = vpop.f32.mrb[0].mxu0
    %v2007 = vadd.f32 0.0, %v2006
    %v2008 = vpop.f32.mrb[0].mxu0
    %2009 = vdwg.mxu0
    %vm2010 = vcmp.ge.s32.totalorder %v1776, 16
    %vm2011 = vcmp.lt.s32.totalorder %v1776, 24
    %vm2012 = vmand %vm2010, %vm2011
    %v2013 = vsel %vm2012, %v2007, %v1934
    %s2014 = scalar_lea.vmem [#allocation10], 24
    %v2015 = vld [vmem:[%s2014] sm:$0xff]
    %v2017 = vsel %vm1778, %v2015, 0
    %2019 = vmatprep.subr.mxu0 0.0
    %2020 = vmatpush1.msra.mxu0 %v1774
    %2021 = vmatprep.subr.mxu0 0.0
    %2022 = vmatpush1.msra.mxu0 0.0
    %2023 = vmatprep.subr.mxu0 0.0
    %2024 = vmatpush1.msra.mxu0 0.0
    %2025 = vmatprep.subr.mxu0 0.0
    %2026 = vmatpush1.msra.mxu0 0.0
    %2027 = vmatprep.subr.mxu0 0.0
    %2028 = vmatpush1.msra.mxu0 0.0
    %2029 = vmatprep.subr.mxu0 0.0
    %2030 = vmatpush1.msra.mxu0 0.0
    %2031 = vmatprep.subr.mxu0 0.0
    %2032 = vmatpush1.msra.mxu0 0.0
    %2033 = vmatprep.subr.mxu0 0.0
    %2034 = vmatpush1.msra.mxu0 0.0
    %2035 = vmatprep.subr.mxu0 0.0
    %2036 = vmatpush1.msra.mxu0 0.0
    %2037 = vmatprep.subr.mxu0 0.0
    %2038 = vmatpush1.msra.mxu0 0.0
    %2039 = vmatprep.subr.mxu0 0.0
    %2040 = vmatpush1.msra.mxu0 0.0
    %2041 = vmatprep.subr.mxu0 0.0
    %2042 = vmatpush1.msra.mxu0 0.0
    %2043 = vmatprep.subr.mxu0 0.0
    %2044 = vmatpush1.msra.mxu0 0.0
    %2045 = vmatprep.subr.mxu0 0.0
    %2046 = vmatpush1.msra.mxu0 0.0
    %2047 = vmatprep.subr.mxu0 0.0
    %2048 = vmatpush1.msra.mxu0 0.0
    %2049 = vmatprep.subr.mxu0 0.0
    %2050 = vmatpush1.msra.mxu0 0.0
    %2051 = vmatprep.subr.mxu0 0.0
    %2052 = vmatpush1.msra.mxu0 0.0
    %2053 = vmatprep.subr.mxu0 0.0
    %2054 = vmatpush1.msra.mxu0 0.0
    %2055 = vmatprep.subr.mxu0 0.0
    %2056 = vmatpush1.msra.mxu0 0.0
    %2057 = vmatprep.subr.mxu0 0.0
    %2058 = vmatpush1.msra.mxu0 0.0
    %2059 = vmatprep.subr.mxu0 0.0
    %2060 = vmatpush1.msra.mxu0 0.0
    %2061 = vmatprep.subr.mxu0 0.0
    %2062 = vmatpush1.msra.mxu0 0.0
    %2063 = vmatprep.subr.mxu0 0.0
    %2064 = vmatpush1.msra.mxu0 0.0
    %2065 = vmatprep.subr.mxu0 0.0
    %2066 = vmatpush1.msra.mxu0 0.0
    %2067 = vmatprep.subr.mxu0 0.0
    %2068 = vmatpush1.msra.mxu0 0.0
    %2069 = vmatprep.subr.mxu0 0.0
    %2070 = vmatpush1.msra.mxu0 0.0
    %2071 = vmatprep.subr.mxu0 0.0
    %2072 = vmatpush1.msra.mxu0 0.0
    %2073 = vmatprep.subr.mxu0 0.0
    %2074 = vmatpush1.msra.mxu0 0.0
    %2075 = vmatprep.subr.mxu0 0.0
    %2076 = vmatpush1.msra.mxu0 0.0
    %2077 = vmatprep.subr.mxu0 0.0
    %2078 = vmatpush1.msra.mxu0 0.0
    %2079 = vmatprep.subr.mxu0 0.0
    %2080 = vmatpush1.msra.mxu0 0.0
    %2081 = vmatprep.subr.mxu0 0.0
    %2082 = vmatpush1.msra.mxu0 0.0
    %2083 = vmatprep.mubr.f32.mxu0 0.0
    %2084 = vmatmul.mubr.f32.gmra.mrb[0].mxu0 %v2017
    %v2085 = vpop.f32.mrb[0].mxu0
    %v2086 = vadd.f32 0.0, %v2085
    %v2087 = vpop.f32.mrb[0].mxu0
    %2088 = vdwg.mxu0
    %vm2089 = vcmp.ge.s32.totalorder %v1776, 24
    %vm2090 = vcmp.lt.s32.totalorder %v1776, 32
    %vm2091 = vmand %vm2089, %vm2090
    %v2092 = vsel %vm2091, %v2086, %v2013
    %2093 = vst [vmem:[#allocation11] sm:$0xff] %v2092
    // Predicated region
    $region50: #{tpu_custom_call.1} parent=1 // pred_check
      _
    $region51: #{tpu_custom_call.1} parent=1 // pred_check_branch
      %2095 = sbr.rel (0) target = $region53
    $region52: #{tpu_custom_call.1} parent=1 // pred_region
      %s2097 = ssub.s32 128, 128
      %2098 = vsyncadd [#allocation4], %s2097
      %s2100 = sshll.u32 [#allocation11], 4
      %s2101 = int_to_ptr.vmem [resolvable:$true] %s2100
      %2103 = dma.vmem_to_hbm [thread:$0]  %s2101, 128, %s7, [#allocation4]
    $region53: #{tpu_custom_call.1} parent=1 // pred_fallthru
      _
    // Predicated region
    $region54: #{tpu_custom_call.1} parent=1 // pred_check
      _
    $region55: #{tpu_custom_call.1} parent=1 // pred_check_branch
      %2105 = sbr.rel (0) target = $region57
    $region56: #{tpu_custom_call.1} parent=1 // pred_region
      %2106 = dma.done [#allocation4], 128
    $region57: #{tpu_custom_call.1} parent=1 // pred_fallthru
      _
    %2107 = vsyncpa [#allocation3], 1
    %2108 = vsyncpa [#allocation6], 1
    %2109 = vsyncpa [#allocation9], 1
    %2110 = vsyncpa [#allocation4], 1

</llo_original>
